<compile_context>
chip_gen: v7x
topology: tpu7x:2x2x1
jax: 0.10.0
libtpu: 0.0.40
codegen_flags: <defaults>
</compile_context>

<pallas_src>
import functools
import math

import jax
import jax.numpy as jnp
from jax.experimental import pallas as pl
from jax.experimental.pallas import tpu as pltpu  # noqa: F401  (kept for scaling knobs)

# ----------------------------- model config (small, synthetic) -----------------------------
VOCAB = 64
MAX_POS = 16
TYPE_VOCAB = 2
HIDDEN = 32
NUM_HEADS = 4
HEAD_DIM = HIDDEN // NUM_HEADS
INTERMEDIATE = 64
NUM_LAYERS = 2
NUM_CLASSES = 3
NUM_CLASSES_PAD = 128          # lane-dense (multiple of 128) padded fc output, sliced outside
LN_EPS = 1e-12
GELU_C = 0.7978845608028654    # sqrt(2/pi)


# ----------------------------------- fused Pallas kernel -----------------------------------
def _fused_classifier_kernel(
    emb_ref, mask_ref, emb_g_ref, emb_b_ref,
    qkv_w_ref, qkv_b_ref, o_w_ref, o_b_ref,
    ln1_g_ref, ln1_b_ref, ff1_w_ref, ff1_b_ref,
    ff2_w_ref, ff2_b_ref, ln2_g_ref, ln2_b_ref,
    fc_w_ref, fc_b_ref, out_ref,
    *, num_layers, num_heads, head_dim, hidden, batch, seq, eps):
  """Whole SentimentClassifier forward for the full [B*S, H] activation slab."""
  rows = batch * seq                      # B*S activation rows (ordered (b, s))

  def layernorm(x, g, b):
    # single-pass variance E[x^2] - mu^2, clamped at 0 (cancellation safety)
    mu = jnp.mean(x, axis=-1, keepdims=True)
    var = jnp.maximum(jnp.mean(x * x, axis=-1, keepdims=True) - mu * mu, 0.0)
    return (x - mu) * jax.lax.rsqrt(var + eps) * g + b

  def gelu(y):
    # BERT tanh-approx GELU (tanh runs on the EUP slot).
    # TODO(synk): exact erf-form GELU for strict HF/PyTorch bit-parity (tiny numeric drift).
    return 0.5 * y * (1.0 + jnp.tanh(GELU_C * (y + 0.044715 * y * y * y)))

  # --- embeddings LayerNorm ---
  x = layernorm(emb_ref[...], emb_g_ref[...], emb_b_ref[...])              # [R, H]
  big_mask = mask_ref[...]                                                  # [NH*R, NH*R]

  # --- encoder layers (statically unrolled; all weights resident in VMEM) ---
  for l in range(num_layers):
    # fused QKV projection (scale already folded into the Q columns of qkv_w): 1 MXU push
    qkv = jnp.dot(x, qkv_w_ref[l],
                  preferred_element_type=jnp.float32) + qkv_b_ref[l]        # [R, 3H]

    # stack heads on the sublane axis; row order is (head, batch, seq)
    q_hs = jnp.concatenate(
        [qkv[:, h * head_dim:(h + 1) * head_dim] for h in range(num_heads)], axis=0)
    k_hs = jnp.concatenate(
        [qkv[:, hidden + h * head_dim:hidden + (h + 1) * head_dim]
         for h in range(num_heads)], axis=0)
    v_hs = jnp.concatenate(
        [qkv[:, 2 * hidden + h * head_dim:2 * hidden + (h + 1) * head_dim]
         for h in range(num_heads)], axis=0)                                # each [NH*R, Dh]

    # ONE scores matmul for all (head, batch) pairs; block-diagonal + key-padding mask
    s = jax.lax.dot_general(q_hs, k_hs, (((1,), (1,)), ((), ())),
                            preferred_element_type=jnp.float32)             # [NH*R, NH*R]
    s = s + big_mask
    s = s - jnp.max(s, axis=-1, keepdims=True)
    p = jnp.exp(s)
    p = p * pl.reciprocal(jnp.sum(p, axis=-1, keepdims=True), approx=True)
    ctx = jnp.dot(p, v_hs, preferred_element_type=jnp.float32)              # [NH*R, Dh]

    # reassemble heads back onto lanes ([NH*R, Dh] -> [R, H]) and do ONE output projection
    attn = jnp.concatenate(
        [ctx[h * rows:(h + 1) * rows, :] for h in range(num_heads)], axis=1)  # [R, H]
    attn_out = jnp.dot(attn, o_w_ref[l],
                       preferred_element_type=jnp.float32) + o_b_ref[l]

    x = layernorm(attn_out + x, ln1_g_ref[l], ln1_b_ref[l])

    # fused FFN: [R, INTERMEDIATE] intermediate never leaves the kernel
    ffh = gelu(jnp.dot(x, ff1_w_ref[l],
                       preferred_element_type=jnp.float32) + ff1_b_ref[l])
    ff = jnp.dot(ffh, ff2_w_ref[l],
                 preferred_element_type=jnp.float32) + ff2_b_ref[l]
    x = layernorm(ff + x, ln2_g_ref[l], ln2_b_ref[l])

  # --- pooled_output = last_hidden_state[:, 0, :]; dropout is identity at inference ---
  # TODO(synk): training-mode dropout (p=0.3) with pltpu.prng_* masking omitted; eval identity.
  cls = jnp.concatenate([x[b * seq:b * seq + 1, :] for b in range(batch)], axis=0)  # [B, H]

  # --- fc (lane-dense 128-wide padded output) ---
  logits = jnp.dot(cls, fc_w_ref[...],
                   preferred_element_type=jnp.float32) + fc_b_ref[...]      # [B, 128]
  out_ref[...] = logits


# ----------------------------------- parameter init -----------------------------------------
def init_params(key):
  def nrm(k, shape, s=0.02):
    return s * jax.random.normal(k, shape, dtype=jnp.float32)

  keys = iter(jax.random.split(key, 64))
  L = NUM_LAYERS
  params = {
      "word_emb": nrm(next(keys), (VOCAB, HIDDEN)),
      "pos_emb": nrm(next(keys), (MAX_POS, HIDDEN)),
      "type_emb": nrm(next(keys), (TYPE_VOCAB, HIDDEN)),
      "emb_ln_g": jnp.ones((1, HIDDEN), jnp.float32),
      "emb_ln_b": jnp.zeros((1, HIDDEN), jnp.float32),
      # per-layer weights stacked along a leading layer axis; q/k/v fused along the output dim
      "qkv_w": nrm(next(keys), (L, HIDDEN, 3 * HIDDEN)),
      "qkv_b": jnp.zeros((L, 1, 3 * HIDDEN), jnp.float32),
      "o_w": nrm(next(keys), (L, HIDDEN, HIDDEN)),
      "o_b": jnp.zeros((L, 1, HIDDEN), jnp.float32),
      "ln1_g": jnp.ones((L, 1, HIDDEN), jnp.float32),
      "ln1_b": jnp.zeros((L, 1, HIDDEN), jnp.float32),
      "ff1_w": nrm(next(keys), (L, HIDDEN, INTERMEDIATE)),
      "ff1_b": jnp.zeros((L, 1, INTERMEDIATE), jnp.float32),
      "ff2_w": nrm(next(keys), (L, INTERMEDIATE, HIDDEN)),
      "ff2_b": jnp.zeros((L, 1, HIDDEN), jnp.float32),
      "ln2_g": jnp.ones((L, 1, HIDDEN), jnp.float32),
      "ln2_b": jnp.zeros((L, 1, HIDDEN), jnp.float32),
  }
  fc_w = nrm(next(keys), (HIDDEN, NUM_CLASSES))
  fc_b = jnp.zeros((NUM_CLASSES,), jnp.float32)
  # lane-dense padded fc parameters (extra lanes are zero; sliced away outside the kernel)
  params["fc_w_pad"] = jnp.zeros((HIDDEN, NUM_CLASSES_PAD),
                                 jnp.float32).at[:, :NUM_CLASSES].set(fc_w)
  params["fc_b_pad"] = jnp.zeros((1, NUM_CLASSES_PAD),
                                 jnp.float32).at[0, :NUM_CLASSES].set(fc_b)
  return params


# ----------------------------------- forward pass --------------------------------------------
def sentiment_classifier_forward(params, input_ids, attention_mask):
  """Equivalent of SentimentClassifier.forward(input_ids, attention_mask)."""
  B, S = input_ids.shape
  L = NUM_LAYERS
  R = B * S

  # --- embeddings (row gathers are plain-JAX glue) ---
  # TODO(synk): move the word-embedding gather in-kernel via PrefetchScalarGridSpec+pl.Element
  # row gather once B*S*H is large enough for the extra HBM round-trip to matter.
  emb = (params["word_emb"][input_ids]
         + params["pos_emb"][None, :S, :]
         + params["type_emb"][0][None, None, :]).astype(jnp.float32)        # [B, S, H]
  emb_flat = emb.reshape(R, HIDDEN)

  # --- fold 1/sqrt(head_dim) into the Q columns of the fused QKV weight (one-time rescale) ---
  scale = 1.0 / math.sqrt(HEAD_DIM)
  qkv_w_scaled = params["qkv_w"].at[:, :, :HIDDEN].multiply(scale)

  # --- block-diagonal additive mask for the head-batched attention matmul ---
  # scores row/col index r = h*(B*S) + b*S + s; valid iff same head, same batch element,
  # and key position s_k is attended (attention_mask == 1).
  ridx = jnp.arange(NUM_HEADS * R)
  head_idx = ridx // R
  batch_idx = (ridx % R) // S
  same_block = (head_idx[:, None] == head_idx[None, :]) & \
               (batch_idx[:, None] == batch_idx[None, :])
  key_ok = jnp.tile(attention_mask.reshape(-1), (NUM_HEADS,)) > 0
  big_mask = jnp.where(same_block & key_ok[None, :], 0.0, -1e9).astype(jnp.float32)

  kernel = functools.partial(
      _fused_classifier_kernel,
      num_layers=L, num_heads=NUM_HEADS, head_dim=HEAD_DIM,
      hidden=HIDDEN, batch=B, seq=S, eps=LN_EPS)

  # Single grid step: whole batch in one block, all weights resident once in VMEM
  # (total footprint ~0.2 MiB — far under every generation's VMEM limit).
  out = pl.pallas_call(
      kernel,
      out_shape=jax.ShapeDtypeStruct((B, NUM_CLASSES_PAD), jnp.float32),
  )(emb_flat, big_mask,
    params["emb_ln_g"], params["emb_ln_b"],
    qkv_w_scaled, params["qkv_b"], params["o_w"], params["o_b"],
    params["ln1_g"], params["ln1_b"], params["ff1_w"], params["ff1_b"],
    params["ff2_w"], params["ff2_b"], params["ln2_g"], params["ln2_b"],
    params["fc_w_pad"], params["fc_b_pad"])

  return out[:, :NUM_CLASSES]                                               # [B, NUM_CLASSES]


# ----------------------------------- pure-JAX reference --------------------------------------
def reference_forward(params, input_ids, attention_mask):
  """Standard (unfused) BERT-encoder forward; scores explicitly divided by sqrt(head_dim)."""
  B, S = input_ids.shape
  emb = (params["word_emb"][input_ids]
         + params["pos_emb"][None, :S, :]
         + params["type_emb"][0][None, None, :])

  def ln(x, g, b):
    mu = jnp.mean(x, -1, keepdims=True)
    var = jnp.mean((x - mu) ** 2, -1, keepdims=True)
    return (x - mu) / jnp.sqrt(var + LN_EPS) * g.reshape(-1) + b.reshape(-1)

  with jax.default_matmul_precision("highest"):
    x = ln(emb, params["emb_ln_g"], params["emb_ln_b"])
    mask = (1.0 - attention_mask.astype(jnp.float32))[:, None, None, :] * -1e9
    for l in range(NUM_LAYERS):
      qkv = x @ params["qkv_w"][l] + params["qkv_b"][l][0]
      q, k, v = jnp.split(qkv, 3, axis=-1)
      heads = lambda t: t.reshape(B, S, NUM_HEADS, HEAD_DIM).transpose(0, 2, 1, 3)
      qh, kh, vh = heads(q), heads(k), heads(v)
      s = jnp.einsum("bhqd,bhkd->bhqk", qh, kh) / math.sqrt(HEAD_DIM) + mask
      p = jax.nn.softmax(s, axis=-1)
      ctx = jnp.einsum("bhqk,bhkd->bhqd", p, vh).transpose(0, 2, 1, 3).reshape(B, S, HIDDEN)
      attn_out = ctx @ params["o_w"][l] + params["o_b"][l][0]
      x = ln(attn_out + x, params["ln1_g"][l], params["ln1_b"][l])
      ffh = x @ params["ff1_w"][l] + params["ff1_b"][l][0]
      ffh = 0.5 * ffh * (1.0 + jnp.tanh(GELU_C * (ffh + 0.044715 * ffh ** 3)))
      ff = ffh @ params["ff2_w"][l] + params["ff2_b"][l][0]
      x = ln(ff + x, params["ln2_g"][l], params["ln2_b"][l])
    pooled = x[:, 0, :]
    return pooled @ params["fc_w_pad"][:, :NUM_CLASSES] + params["fc_b_pad"][0, :NUM_CLASSES]


# --------------------------------------- main ------------------------------------------------
if __name__ == "__main__":
  key = jax.random.PRNGKey(0)
  pkey, ikey = jax.random.split(key)

  params = init_params(pkey)

  B, S = 2, 8
  input_ids = jax.random.randint(ikey, (B, S), 0, VOCAB, dtype=jnp.int32)
  # exercise the padding-mask path: last two tokens of the second example are padding
  attention_mask = jnp.ones((B, S), jnp.int32).at[1, S - 2:].set(0)

  logits = sentiment_classifier_forward(params, input_ids, attention_mask)
  logits = jax.block_until_ready(logits)

  assert logits.shape == (B, NUM_CLASSES)
  assert logits.dtype == jnp.float32
  assert bool(jnp.all(jnp.isfinite(logits)))

  ref = jax.block_until_ready(reference_forward(params, input_ids, attention_mask))
  assert bool(jnp.all(jnp.abs(logits - ref) < 1e-2)), "kernel/reference mismatch"

  print("KERNEL_OK")
</pallas_src>

<mosaic_0001>
module attributes {stable_mosaic.version = 11 : i64} {
  func.func @_fused_classifier_kernel(%arg0: memref<16x32xf32, #tpu.memory_space<vmem>>, %arg1: memref<64x64xf32, #tpu.memory_space<vmem>>, %arg2: memref<1x32xf32, #tpu.memory_space<vmem>>, %arg3: memref<1x32xf32, #tpu.memory_space<vmem>>, %arg4: memref<2x32x96xf32, #tpu.memory_space<vmem>>, %arg5: memref<2x1x96xf32, #tpu.memory_space<vmem>>, %arg6: memref<2x32x32xf32, #tpu.memory_space<vmem>>, %arg7: memref<2x1x32xf32, #tpu.memory_space<vmem>>, %arg8: memref<2x1x32xf32, #tpu.memory_space<vmem>>, %arg9: memref<2x1x32xf32, #tpu.memory_space<vmem>>, %arg10: memref<2x32x64xf32, #tpu.memory_space<vmem>>, %arg11: memref<2x1x64xf32, #tpu.memory_space<vmem>>, %arg12: memref<2x64x32xf32, #tpu.memory_space<vmem>>, %arg13: memref<2x1x32xf32, #tpu.memory_space<vmem>>, %arg14: memref<2x1x32xf32, #tpu.memory_space<vmem>>, %arg15: memref<2x1x32xf32, #tpu.memory_space<vmem>>, %arg16: memref<32x128xf32, #tpu.memory_space<vmem>>, %arg17: memref<1x128xf32, #tpu.memory_space<vmem>>, %arg18: memref<2x128xf32, #tpu.memory_space<vmem>>) attributes {dimension_semantics = [], scalar_prefetch = 0 : i64, scratch_operands = 0 : i64, tpu.core_type = #tpu.core_type<tc>} {
    %c0 = arith.constant 0 : index
    %c0_0 = arith.constant 0 : index
    %0 = vector.load %arg0[%c0, %c0_0] : memref<16x32xf32, #tpu.memory_space<vmem>>, vector<16x32xf32>
    %c0_1 = arith.constant 0 : index
    %c0_2 = arith.constant 0 : index
    %1 = vector.load %arg2[%c0_1, %c0_2] : memref<1x32xf32, #tpu.memory_space<vmem>>, vector<1x32xf32>
    %c0_3 = arith.constant 0 : index
    %c0_4 = arith.constant 0 : index
    %2 = vector.load %arg3[%c0_3, %c0_4] : memref<1x32xf32, #tpu.memory_space<vmem>>, vector<1x32xf32>
    %cst = arith.constant dense<0.000000e+00> : vector<16xf32>
    %3 = vector.multi_reduction <add>, %0, %cst [1] : vector<16x32xf32> to vector<16xf32>
    %4 = vector.shape_cast %3 : vector<16xf32> to vector<16x1xf32>
    %cst_5 = arith.constant 3.200000e+01 : f32
    %5 = vector.broadcast %cst_5 : f32 to vector<16x1xf32>
    %6 = arith.divf %4, %5 : vector<16x1xf32>
    %7 = arith.mulf %0, %0 : vector<16x32xf32>
    %cst_6 = arith.constant dense<0.000000e+00> : vector<16xf32>
    %8 = vector.multi_reduction <add>, %7, %cst_6 [1] : vector<16x32xf32> to vector<16xf32>
    %9 = vector.shape_cast %8 : vector<16xf32> to vector<16x1xf32>
    %cst_7 = arith.constant 3.200000e+01 : f32
    %10 = vector.broadcast %cst_7 : f32 to vector<16x1xf32>
    %11 = arith.divf %9, %10 : vector<16x1xf32>
    %12 = arith.mulf %6, %6 : vector<16x1xf32>
    %13 = arith.subf %11, %12 : vector<16x1xf32>
    %cst_8 = arith.constant 0.000000e+00 : f32
    %14 = vector.broadcast %cst_8 : f32 to vector<16x1xf32>
    %15 = arith.maximumf %13, %14 : vector<16x1xf32>
    %16 = vector.broadcast %6 : vector<16x1xf32> to vector<16x32xf32>
    %17 = arith.subf %0, %16 : vector<16x32xf32>
    %cst_9 = arith.constant 9.99999996E-13 : f32
    %18 = vector.broadcast %cst_9 : f32 to vector<16x1xf32>
    %19 = arith.addf %15, %18 : vector<16x1xf32>
    %20 = math.rsqrt %19 : vector<16x1xf32>
    %21 = vector.broadcast %20 : vector<16x1xf32> to vector<16x32xf32>
    %22 = arith.mulf %17, %21 : vector<16x32xf32>
    %23 = vector.broadcast %1 : vector<1x32xf32> to vector<16x32xf32>
    %24 = arith.mulf %22, %23 : vector<16x32xf32>
    %25 = vector.broadcast %2 : vector<1x32xf32> to vector<16x32xf32>
    %26 = arith.addf %24, %25 : vector<16x32xf32>
    %c0_10 = arith.constant 0 : index
    %c0_11 = arith.constant 0 : index
    %27 = vector.load %arg1[%c0_10, %c0_11] : memref<64x64xf32, #tpu.memory_space<vmem>>, vector<64x64xf32>
    %c0_12 = arith.constant 0 : index
    %c0_13 = arith.constant 0 : index
    %c0_14 = arith.constant 0 : index
    %28 = vector.load %arg4[%c0_12, %c0_13, %c0_14] : memref<2x32x96xf32, #tpu.memory_space<vmem>>, vector<1x32x96xf32>
    %29 = vector.shape_cast %28 : vector<1x32x96xf32> to vector<32x96xf32>
    %cst_15 = arith.constant dense<0.000000e+00> : vector<16x96xf32>
    %30 = tpu.matmul %26, %29, %cst_15 {dimension_numbers = #tpu.dot_dimension_numbers<[1], [0], [0], [1], [0, 0, 1, 1], [], []>} : vector<16x32xf32>, vector<32x96xf32>, vector<16x96xf32> -> vector<16x96xf32>
    %c0_16 = arith.constant 0 : index
    %c0_17 = arith.constant 0 : index
    %c0_18 = arith.constant 0 : index
    %31 = vector.load %arg5[%c0_16, %c0_17, %c0_18] : memref<2x1x96xf32, #tpu.memory_space<vmem>>, vector<1x1x96xf32>
    %32 = vector.shape_cast %31 : vector<1x1x96xf32> to vector<1x96xf32>
    %33 = vector.broadcast %32 : vector<1x96xf32> to vector<16x96xf32>
    %34 = arith.addf %30, %33 : vector<16x96xf32>
    %35 = vector.extract_strided_slice %34 {offsets = [0, 0], sizes = [16, 8], strides = [1, 1]} : vector<16x96xf32> to vector<16x8xf32>
    %36 = vector.extract_strided_slice %34 {offsets = [0, 8], sizes = [16, 8], strides = [1, 1]} : vector<16x96xf32> to vector<16x8xf32>
    %37 = vector.extract_strided_slice %34 {offsets = [0, 16], sizes = [16, 8], strides = [1, 1]} : vector<16x96xf32> to vector<16x8xf32>
    %38 = vector.extract_strided_slice %34 {offsets = [0, 24], sizes = [16, 8], strides = [1, 1]} : vector<16x96xf32> to vector<16x8xf32>
    %39 = tpu.concatenate %35, %36, %37, %38 in 0 : vector<16x8xf32>, vector<16x8xf32>, vector<16x8xf32>, vector<16x8xf32> -> vector<64x8xf32>
    %40 = vector.extract_strided_slice %34 {offsets = [0, 32], sizes = [16, 8], strides = [1, 1]} : vector<16x96xf32> to vector<16x8xf32>
    %41 = vector.extract_strided_slice %34 {offsets = [0, 40], sizes = [16, 8], strides = [1, 1]} : vector<16x96xf32> to vector<16x8xf32>
    %42 = vector.extract_strided_slice %34 {offsets = [0, 48], sizes = [16, 8], strides = [1, 1]} : vector<16x96xf32> to vector<16x8xf32>
    %43 = vector.extract_strided_slice %34 {offsets = [0, 56], sizes = [16, 8], strides = [1, 1]} : vector<16x96xf32> to vector<16x8xf32>
    %44 = tpu.concatenate %40, %41, %42, %43 in 0 : vector<16x8xf32>, vector<16x8xf32>, vector<16x8xf32>, vector<16x8xf32> -> vector<64x8xf32>
    %45 = vector.extract_strided_slice %34 {offsets = [0, 64], sizes = [16, 8], strides = [1, 1]} : vector<16x96xf32> to vector<16x8xf32>
    %46 = vector.extract_strided_slice %34 {offsets = [0, 72], sizes = [16, 8], strides = [1, 1]} : vector<16x96xf32> to vector<16x8xf32>
    %47 = vector.extract_strided_slice %34 {offsets = [0, 80], sizes = [16, 8], strides = [1, 1]} : vector<16x96xf32> to vector<16x8xf32>
    %48 = vector.extract_strided_slice %34 {offsets = [0, 88], sizes = [16, 8], strides = [1, 1]} : vector<16x96xf32> to vector<16x8xf32>
    %49 = tpu.concatenate %45, %46, %47, %48 in 0 : vector<16x8xf32>, vector<16x8xf32>, vector<16x8xf32>, vector<16x8xf32> -> vector<64x8xf32>
    %cst_19 = arith.constant dense<0.000000e+00> : vector<64x64xf32>
    %50 = tpu.matmul %39, %44, %cst_19 {dimension_numbers = #tpu.dot_dimension_numbers<[1], [1], [0], [0], [0, 0, 1, 0], [], []>} : vector<64x8xf32>, vector<64x8xf32>, vector<64x64xf32> -> vector<64x64xf32>
    %51 = arith.addf %50, %27 : vector<64x64xf32>
    %cst_20 = arith.constant dense<0xFF800000> : vector<64xf32>
    %52 = vector.multi_reduction <maximumf>, %51, %cst_20 [1] : vector<64x64xf32> to vector<64xf32>
    %53 = vector.shape_cast %52 : vector<64xf32> to vector<64x1xf32>
    %54 = vector.broadcast %53 : vector<64x1xf32> to vector<64x64xf32>
    %55 = arith.subf %51, %54 : vector<64x64xf32>
    %56 = math.exp %55 : vector<64x64xf32>
    %cst_21 = arith.constant dense<0.000000e+00> : vector<64xf32>
    %57 = vector.multi_reduction <add>, %56, %cst_21 [1] : vector<64x64xf32> to vector<64xf32>
    %58 = vector.shape_cast %57 : vector<64xf32> to vector<64x1xf32>
    %59 = tpu.reciprocal %58 {approx = true} : vector<64x1xf32> -> vector<64x1xf32>
    %60 = vector.broadcast %59 : vector<64x1xf32> to vector<64x64xf32>
    %61 = arith.mulf %56, %60 : vector<64x64xf32>
    %cst_22 = arith.constant dense<0.000000e+00> : vector<64x8xf32>
    %62 = tpu.matmul %61, %49, %cst_22 {dimension_numbers = #tpu.dot_dimension_numbers<[1], [0], [0], [1], [0, 0, 1, 1], [], []>} : vector<64x64xf32>, vector<64x8xf32>, vector<64x8xf32> -> vector<64x8xf32>
    %63 = vector.extract_strided_slice %62 {offsets = [0, 0], sizes = [16, 8], strides = [1, 1]} : vector<64x8xf32> to vector<16x8xf32>
    %64 = vector.extract_strided_slice %62 {offsets = [16, 0], sizes = [16, 8], strides = [1, 1]} : vector<64x8xf32> to vector<16x8xf32>
    %65 = vector.extract_strided_slice %62 {offsets = [32, 0], sizes = [16, 8], strides = [1, 1]} : vector<64x8xf32> to vector<16x8xf32>
    %66 = vector.extract_strided_slice %62 {offsets = [48, 0], sizes = [16, 8], strides = [1, 1]} : vector<64x8xf32> to vector<16x8xf32>
    %67 = tpu.concatenate %63, %64, %65, %66 in 1 : vector<16x8xf32>, vector<16x8xf32>, vector<16x8xf32>, vector<16x8xf32> -> vector<16x32xf32>
    %c0_23 = arith.constant 0 : index
    %c0_24 = arith.constant 0 : index
    %c0_25 = arith.constant 0 : index
    %68 = vector.load %arg6[%c0_23, %c0_24, %c0_25] : memref<2x32x32xf32, #tpu.memory_space<vmem>>, vector<1x32x32xf32>
    %69 = vector.shape_cast %68 : vector<1x32x32xf32> to vector<32x32xf32>
    %cst_26 = arith.constant dense<0.000000e+00> : vector<16x32xf32>
    %70 = tpu.matmul %67, %69, %cst_26 {dimension_numbers = #tpu.dot_dimension_numbers<[1], [0], [0], [1], [0, 0, 1, 1], [], []>} : vector<16x32xf32>, vector<32x32xf32>, vector<16x32xf32> -> vector<16x32xf32>
    %c0_27 = arith.constant 0 : index
    %c0_28 = arith.constant 0 : index
    %c0_29 = arith.constant 0 : index
    %71 = vector.load %arg7[%c0_27, %c0_28, %c0_29] : memref<2x1x32xf32, #tpu.memory_space<vmem>>, vector<1x1x32xf32>
    %72 = vector.shape_cast %71 : vector<1x1x32xf32> to vector<1x32xf32>
    %73 = vector.broadcast %72 : vector<1x32xf32> to vector<16x32xf32>
    %74 = arith.addf %70, %73 : vector<16x32xf32>
    %75 = arith.addf %74, %26 : vector<16x32xf32>
    %c0_30 = arith.constant 0 : index
    %c0_31 = arith.constant 0 : index
    %c0_32 = arith.constant 0 : index
    %76 = vector.load %arg8[%c0_30, %c0_31, %c0_32] : memref<2x1x32xf32, #tpu.memory_space<vmem>>, vector<1x1x32xf32>
    %77 = vector.shape_cast %76 : vector<1x1x32xf32> to vector<1x32xf32>
    %c0_33 = arith.constant 0 : index
    %c0_34 = arith.constant 0 : index
    %c0_35 = arith.constant 0 : index
    %78 = vector.load %arg9[%c0_33, %c0_34, %c0_35] : memref<2x1x32xf32, #tpu.memory_space<vmem>>, vector<1x1x32xf32>
    %79 = vector.shape_cast %78 : vector<1x1x32xf32> to vector<1x32xf32>
    %cst_36 = arith.constant dense<0.000000e+00> : vector<16xf32>
    %80 = vector.multi_reduction <add>, %75, %cst_36 [1] : vector<16x32xf32> to vector<16xf32>
    %81 = vector.shape_cast %80 : vector<16xf32> to vector<16x1xf32>
    %cst_37 = arith.constant 3.200000e+01 : f32
    %82 = vector.broadcast %cst_37 : f32 to vector<16x1xf32>
    %83 = arith.divf %81, %82 : vector<16x1xf32>
    %84 = arith.mulf %75, %75 : vector<16x32xf32>
    %cst_38 = arith.constant dense<0.000000e+00> : vector<16xf32>
    %85 = vector.multi_reduction <add>, %84, %cst_38 [1] : vector<16x32xf32> to vector<16xf32>
    %86 = vector.shape_cast %85 : vector<16xf32> to vector<16x1xf32>
    %cst_39 = arith.constant 3.200000e+01 : f32
    %87 = vector.broadcast %cst_39 : f32 to vector<16x1xf32>
    %88 = arith.divf %86, %87 : vector<16x1xf32>
    %89 = arith.mulf %83, %83 : vector<16x1xf32>
    %90 = arith.subf %88, %89 : vector<16x1xf32>
    %cst_40 = arith.constant 0.000000e+00 : f32
    %91 = vector.broadcast %cst_40 : f32 to vector<16x1xf32>
    %92 = arith.maximumf %90, %91 : vector<16x1xf32>
    %93 = vector.broadcast %83 : vector<16x1xf32> to vector<16x32xf32>
    %94 = arith.subf %75, %93 : vector<16x32xf32>
    %cst_41 = arith.constant 9.99999996E-13 : f32
    %95 = vector.broadcast %cst_41 : f32 to vector<16x1xf32>
    %96 = arith.addf %92, %95 : vector<16x1xf32>
    %97 = math.rsqrt %96 : vector<16x1xf32>
    %98 = vector.broadcast %97 : vector<16x1xf32> to vector<16x32xf32>
    %99 = arith.mulf %94, %98 : vector<16x32xf32>
    %100 = vector.broadcast %77 : vector<1x32xf32> to vector<16x32xf32>
    %101 = arith.mulf %99, %100 : vector<16x32xf32>
    %102 = vector.broadcast %79 : vector<1x32xf32> to vector<16x32xf32>
    %103 = arith.addf %101, %102 : vector<16x32xf32>
    %c0_42 = arith.constant 0 : index
    %c0_43 = arith.constant 0 : index
    %c0_44 = arith.constant 0 : index
    %104 = vector.load %arg10[%c0_42, %c0_43, %c0_44] : memref<2x32x64xf32, #tpu.memory_space<vmem>>, vector<1x32x64xf32>
    %105 = vector.shape_cast %104 : vector<1x32x64xf32> to vector<32x64xf32>
    %cst_45 = arith.constant dense<0.000000e+00> : vector<16x64xf32>
    %106 = tpu.matmul %103, %105, %cst_45 {dimension_numbers = #tpu.dot_dimension_numbers<[1], [0], [0], [1], [0, 0, 1, 1], [], []>} : vector<16x32xf32>, vector<32x64xf32>, vector<16x64xf32> -> vector<16x64xf32>
    %c0_46 = arith.constant 0 : index
    %c0_47 = arith.constant 0 : index
    %c0_48 = arith.constant 0 : index
    %107 = vector.load %arg11[%c0_46, %c0_47, %c0_48] : memref<2x1x64xf32, #tpu.memory_space<vmem>>, vector<1x1x64xf32>
    %108 = vector.shape_cast %107 : vector<1x1x64xf32> to vector<1x64xf32>
    %109 = vector.broadcast %108 : vector<1x64xf32> to vector<16x64xf32>
    %110 = arith.addf %106, %109 : vector<16x64xf32>
    %cst_49 = arith.constant 5.000000e-01 : f32
    %111 = vector.broadcast %cst_49 : f32 to vector<16x64xf32>
    %112 = arith.mulf %111, %110 : vector<16x64xf32>
    %cst_50 = arith.constant 4.471500e-02 : f32
    %113 = vector.broadcast %cst_50 : f32 to vector<16x64xf32>
    %114 = arith.mulf %113, %110 : vector<16x64xf32>
    %115 = arith.mulf %114, %110 : vector<16x64xf32>
    %116 = arith.mulf %115, %110 : vector<16x64xf32>
    %117 = arith.addf %110, %116 : vector<16x64xf32>
    %cst_51 = arith.constant 0.797884583 : f32
    %118 = vector.broadcast %cst_51 : f32 to vector<16x64xf32>
    %119 = arith.mulf %118, %117 : vector<16x64xf32>
    %120 = math.tanh %119 : vector<16x64xf32>
    %cst_52 = arith.constant 1.000000e+00 : f32
    %121 = vector.broadcast %cst_52 : f32 to vector<16x64xf32>
    %122 = arith.addf %121, %120 : vector<16x64xf32>
    %123 = arith.mulf %112, %122 : vector<16x64xf32>
    %c0_53 = arith.constant 0 : index
    %c0_54 = arith.constant 0 : index
    %c0_55 = arith.constant 0 : index
    %124 = vector.load %arg12[%c0_53, %c0_54, %c0_55] : memref<2x64x32xf32, #tpu.memory_space<vmem>>, vector<1x64x32xf32>
    %125 = vector.shape_cast %124 : vector<1x64x32xf32> to vector<64x32xf32>
    %cst_56 = arith.constant dense<0.000000e+00> : vector<16x32xf32>
    %126 = tpu.matmul %123, %125, %cst_56 {dimension_numbers = #tpu.dot_dimension_numbers<[1], [0], [0], [1], [0, 0, 1, 1], [], []>} : vector<16x64xf32>, vector<64x32xf32>, vector<16x32xf32> -> vector<16x32xf32>
    %c0_57 = arith.constant 0 : index
    %c0_58 = arith.constant 0 : index
    %c0_59 = arith.constant 0 : index
    %127 = vector.load %arg13[%c0_57, %c0_58, %c0_59] : memref<2x1x32xf32, #tpu.memory_space<vmem>>, vector<1x1x32xf32>
    %128 = vector.shape_cast %127 : vector<1x1x32xf32> to vector<1x32xf32>
    %129 = vector.broadcast %128 : vector<1x32xf32> to vector<16x32xf32>
    %130 = arith.addf %126, %129 : vector<16x32xf32>
    %131 = arith.addf %130, %103 : vector<16x32xf32>
    %c0_60 = arith.constant 0 : index
    %c0_61 = arith.constant 0 : index
    %c0_62 = arith.constant 0 : index
    %132 = vector.load %arg14[%c0_60, %c0_61, %c0_62] : memref<2x1x32xf32, #tpu.memory_space<vmem>>, vector<1x1x32xf32>
    %133 = vector.shape_cast %132 : vector<1x1x32xf32> to vector<1x32xf32>
    %c0_63 = arith.constant 0 : index
    %c0_64 = arith.constant 0 : index
    %c0_65 = arith.constant 0 : index
    %134 = vector.load %arg15[%c0_63, %c0_64, %c0_65] : memref<2x1x32xf32, #tpu.memory_space<vmem>>, vector<1x1x32xf32>
    %135 = vector.shape_cast %134 : vector<1x1x32xf32> to vector<1x32xf32>
    %cst_66 = arith.constant dense<0.000000e+00> : vector<16xf32>
    %136 = vector.multi_reduction <add>, %131, %cst_66 [1] : vector<16x32xf32> to vector<16xf32>
    %137 = vector.shape_cast %136 : vector<16xf32> to vector<16x1xf32>
    %cst_67 = arith.constant 3.200000e+01 : f32
    %138 = vector.broadcast %cst_67 : f32 to vector<16x1xf32>
    %139 = arith.divf %137, %138 : vector<16x1xf32>
    %140 = arith.mulf %131, %131 : vector<16x32xf32>
    %cst_68 = arith.constant dense<0.000000e+00> : vector<16xf32>
    %141 = vector.multi_reduction <add>, %140, %cst_68 [1] : vector<16x32xf32> to vector<16xf32>
    %142 = vector.shape_cast %141 : vector<16xf32> to vector<16x1xf32>
    %cst_69 = arith.constant 3.200000e+01 : f32
    %143 = vector.broadcast %cst_69 : f32 to vector<16x1xf32>
    %144 = arith.divf %142, %143 : vector<16x1xf32>
    %145 = arith.mulf %139, %139 : vector<16x1xf32>
    %146 = arith.subf %144, %145 : vector<16x1xf32>
    %cst_70 = arith.constant 0.000000e+00 : f32
    %147 = vector.broadcast %cst_70 : f32 to vector<16x1xf32>
    %148 = arith.maximumf %146, %147 : vector<16x1xf32>
    %149 = vector.broadcast %139 : vector<16x1xf32> to vector<16x32xf32>
    %150 = arith.subf %131, %149 : vector<16x32xf32>
    %cst_71 = arith.constant 9.99999996E-13 : f32
    %151 = vector.broadcast %cst_71 : f32 to vector<16x1xf32>
    %152 = arith.addf %148, %151 : vector<16x1xf32>
    %153 = math.rsqrt %152 : vector<16x1xf32>
    %154 = vector.broadcast %153 : vector<16x1xf32> to vector<16x32xf32>
    %155 = arith.mulf %150, %154 : vector<16x32xf32>
    %156 = vector.broadcast %133 : vector<1x32xf32> to vector<16x32xf32>
    %157 = arith.mulf %155, %156 : vector<16x32xf32>
    %158 = vector.broadcast %135 : vector<1x32xf32> to vector<16x32xf32>
    %159 = arith.addf %157, %158 : vector<16x32xf32>
    %c1 = arith.constant 1 : index
    %c0_72 = arith.constant 0 : index
    %c0_73 = arith.constant 0 : index
    %160 = vector.load %arg4[%c1, %c0_72, %c0_73] : memref<2x32x96xf32, #tpu.memory_space<vmem>>, vector<1x32x96xf32>
    %161 = vector.shape_cast %160 : vector<1x32x96xf32> to vector<32x96xf32>
    %cst_74 = arith.constant dense<0.000000e+00> : vector<16x96xf32>
    %162 = tpu.matmul %159, %161, %cst_74 {dimension_numbers = #tpu.dot_dimension_numbers<[1], [0], [0], [1], [0, 0, 1, 1], [], []>} : vector<16x32xf32>, vector<32x96xf32>, vector<16x96xf32> -> vector<16x96xf32>
    %c1_75 = arith.constant 1 : index
    %c0_76 = arith.constant 0 : index
    %c0_77 = arith.constant 0 : index
    %163 = vector.load %arg5[%c1_75, %c0_76, %c0_77] : memref<2x1x96xf32, #tpu.memory_space<vmem>>, vector<1x1x96xf32>
    %164 = vector.shape_cast %163 : vector<1x1x96xf32> to vector<1x96xf32>
    %165 = vector.broadcast %164 : vector<1x96xf32> to vector<16x96xf32>
    %166 = arith.addf %162, %165 : vector<16x96xf32>
    %167 = vector.extract_strided_slice %166 {offsets = [0, 0], sizes = [16, 8], strides = [1, 1]} : vector<16x96xf32> to vector<16x8xf32>
    %168 = vector.extract_strided_slice %166 {offsets = [0, 8], sizes = [16, 8], strides = [1, 1]} : vector<16x96xf32> to vector<16x8xf32>
    %169 = vector.extract_strided_slice %166 {offsets = [0, 16], sizes = [16, 8], strides = [1, 1]} : vector<16x96xf32> to vector<16x8xf32>
    %170 = vector.extract_strided_slice %166 {offsets = [0, 24], sizes = [16, 8], strides = [1, 1]} : vector<16x96xf32> to vector<16x8xf32>
    %171 = tpu.concatenate %167, %168, %169, %170 in 0 : vector<16x8xf32>, vector<16x8xf32>, vector<16x8xf32>, vector<16x8xf32> -> vector<64x8xf32>
    %172 = vector.extract_strided_slice %166 {offsets = [0, 32], sizes = [16, 8], strides = [1, 1]} : vector<16x96xf32> to vector<16x8xf32>
    %173 = vector.extract_strided_slice %166 {offsets = [0, 40], sizes = [16, 8], strides = [1, 1]} : vector<16x96xf32> to vector<16x8xf32>
    %174 = vector.extract_strided_slice %166 {offsets = [0, 48], sizes = [16, 8], strides = [1, 1]} : vector<16x96xf32> to vector<16x8xf32>
    %175 = vector.extract_strided_slice %166 {offsets = [0, 56], sizes = [16, 8], strides = [1, 1]} : vector<16x96xf32> to vector<16x8xf32>
    %176 = tpu.concatenate %172, %173, %174, %175 in 0 : vector<16x8xf32>, vector<16x8xf32>, vector<16x8xf32>, vector<16x8xf32> -> vector<64x8xf32>
    %177 = vector.extract_strided_slice %166 {offsets = [0, 64], sizes = [16, 8], strides = [1, 1]} : vector<16x96xf32> to vector<16x8xf32>
    %178 = vector.extract_strided_slice %166 {offsets = [0, 72], sizes = [16, 8], strides = [1, 1]} : vector<16x96xf32> to vector<16x8xf32>
    %179 = vector.extract_strided_slice %166 {offsets = [0, 80], sizes = [16, 8], strides = [1, 1]} : vector<16x96xf32> to vector<16x8xf32>
    %180 = vector.extract_strided_slice %166 {offsets = [0, 88], sizes = [16, 8], strides = [1, 1]} : vector<16x96xf32> to vector<16x8xf32>
    %181 = tpu.concatenate %177, %178, %179, %180 in 0 : vector<16x8xf32>, vector<16x8xf32>, vector<16x8xf32>, vector<16x8xf32> -> vector<64x8xf32>
    %cst_78 = arith.constant dense<0.000000e+00> : vector<64x64xf32>
    %182 = tpu.matmul %171, %176, %cst_78 {dimension_numbers = #tpu.dot_dimension_numbers<[1], [1], [0], [0], [0, 0, 1, 0], [], []>} : vector<64x8xf32>, vector<64x8xf32>, vector<64x64xf32> -> vector<64x64xf32>
    %183 = arith.addf %182, %27 : vector<64x64xf32>
    %cst_79 = arith.constant dense<0xFF800000> : vector<64xf32>
    %184 = vector.multi_reduction <maximumf>, %183, %cst_79 [1] : vector<64x64xf32> to vector<64xf32>
    %185 = vector.shape_cast %184 : vector<64xf32> to vector<64x1xf32>
    %186 = vector.broadcast %185 : vector<64x1xf32> to vector<64x64xf32>
    %187 = arith.subf %183, %186 : vector<64x64xf32>
    %188 = math.exp %187 : vector<64x64xf32>
    %cst_80 = arith.constant dense<0.000000e+00> : vector<64xf32>
    %189 = vector.multi_reduction <add>, %188, %cst_80 [1] : vector<64x64xf32> to vector<64xf32>
    %190 = vector.shape_cast %189 : vector<64xf32> to vector<64x1xf32>
    %191 = tpu.reciprocal %190 {approx = true} : vector<64x1xf32> -> vector<64x1xf32>
    %192 = vector.broadcast %191 : vector<64x1xf32> to vector<64x64xf32>
    %193 = arith.mulf %188, %192 : vector<64x64xf32>
    %cst_81 = arith.constant dense<0.000000e+00> : vector<64x8xf32>
    %194 = tpu.matmul %193, %181, %cst_81 {dimension_numbers = #tpu.dot_dimension_numbers<[1], [0], [0], [1], [0, 0, 1, 1], [], []>} : vector<64x64xf32>, vector<64x8xf32>, vector<64x8xf32> -> vector<64x8xf32>
    %195 = vector.extract_strided_slice %194 {offsets = [0, 0], sizes = [16, 8], strides = [1, 1]} : vector<64x8xf32> to vector<16x8xf32>
    %196 = vector.extract_strided_slice %194 {offsets = [16, 0], sizes = [16, 8], strides = [1, 1]} : vector<64x8xf32> to vector<16x8xf32>
    %197 = vector.extract_strided_slice %194 {offsets = [32, 0], sizes = [16, 8], strides = [1, 1]} : vector<64x8xf32> to vector<16x8xf32>
    %198 = vector.extract_strided_slice %194 {offsets = [48, 0], sizes = [16, 8], strides = [1, 1]} : vector<64x8xf32> to vector<16x8xf32>
    %199 = tpu.concatenate %195, %196, %197, %198 in 1 : vector<16x8xf32>, vector<16x8xf32>, vector<16x8xf32>, vector<16x8xf32> -> vector<16x32xf32>
    %c1_82 = arith.constant 1 : index
    %c0_83 = arith.constant 0 : index
    %c0_84 = arith.constant 0 : index
    %200 = vector.load %arg6[%c1_82, %c0_83, %c0_84] : memref<2x32x32xf32, #tpu.memory_space<vmem>>, vector<1x32x32xf32>
    %201 = vector.shape_cast %200 : vector<1x32x32xf32> to vector<32x32xf32>
    %cst_85 = arith.constant dense<0.000000e+00> : vector<16x32xf32>
    %202 = tpu.matmul %199, %201, %cst_85 {dimension_numbers = #tpu.dot_dimension_numbers<[1], [0], [0], [1], [0, 0, 1, 1], [], []>} : vector<16x32xf32>, vector<32x32xf32>, vector<16x32xf32> -> vector<16x32xf32>
    %c1_86 = arith.constant 1 : index
    %c0_87 = arith.constant 0 : index
    %c0_88 = arith.constant 0 : index
    %203 = vector.load %arg7[%c1_86, %c0_87, %c0_88] : memref<2x1x32xf32, #tpu.memory_space<vmem>>, vector<1x1x32xf32>
    %204 = vector.shape_cast %203 : vector<1x1x32xf32> to vector<1x32xf32>
    %205 = vector.broadcast %204 : vector<1x32xf32> to vector<16x32xf32>
    %206 = arith.addf %202, %205 : vector<16x32xf32>
    %207 = arith.addf %206, %159 : vector<16x32xf32>
    %c1_89 = arith.constant 1 : index
    %c0_90 = arith.constant 0 : index
    %c0_91 = arith.constant 0 : index
    %208 = vector.load %arg8[%c1_89, %c0_90, %c0_91] : memref<2x1x32xf32, #tpu.memory_space<vmem>>, vector<1x1x32xf32>
    %209 = vector.shape_cast %208 : vector<1x1x32xf32> to vector<1x32xf32>
    %c1_92 = arith.constant 1 : index
    %c0_93 = arith.constant 0 : index
    %c0_94 = arith.constant 0 : index
    %210 = vector.load %arg9[%c1_92, %c0_93, %c0_94] : memref<2x1x32xf32, #tpu.memory_space<vmem>>, vector<1x1x32xf32>
    %211 = vector.shape_cast %210 : vector<1x1x32xf32> to vector<1x32xf32>
    %cst_95 = arith.constant dense<0.000000e+00> : vector<16xf32>
    %212 = vector.multi_reduction <add>, %207, %cst_95 [1] : vector<16x32xf32> to vector<16xf32>
    %213 = vector.shape_cast %212 : vector<16xf32> to vector<16x1xf32>
    %cst_96 = arith.constant 3.200000e+01 : f32
    %214 = vector.broadcast %cst_96 : f32 to vector<16x1xf32>
    %215 = arith.divf %213, %214 : vector<16x1xf32>
    %216 = arith.mulf %207, %207 : vector<16x32xf32>
    %cst_97 = arith.constant dense<0.000000e+00> : vector<16xf32>
    %217 = vector.multi_reduction <add>, %216, %cst_97 [1] : vector<16x32xf32> to vector<16xf32>
    %218 = vector.shape_cast %217 : vector<16xf32> to vector<16x1xf32>
    %cst_98 = arith.constant 3.200000e+01 : f32
    %219 = vector.broadcast %cst_98 : f32 to vector<16x1xf32>
    %220 = arith.divf %218, %219 : vector<16x1xf32>
    %221 = arith.mulf %215, %215 : vector<16x1xf32>
    %222 = arith.subf %220, %221 : vector<16x1xf32>
    %cst_99 = arith.constant 0.000000e+00 : f32
    %223 = vector.broadcast %cst_99 : f32 to vector<16x1xf32>
    %224 = arith.maximumf %222, %223 : vector<16x1xf32>
    %225 = vector.broadcast %215 : vector<16x1xf32> to vector<16x32xf32>
    %226 = arith.subf %207, %225 : vector<16x32xf32>
    %cst_100 = arith.constant 9.99999996E-13 : f32
    %227 = vector.broadcast %cst_100 : f32 to vector<16x1xf32>
    %228 = arith.addf %224, %227 : vector<16x1xf32>
    %229 = math.rsqrt %228 : vector<16x1xf32>
    %230 = vector.broadcast %229 : vector<16x1xf32> to vector<16x32xf32>
    %231 = arith.mulf %226, %230 : vector<16x32xf32>
    %232 = vector.broadcast %209 : vector<1x32xf32> to vector<16x32xf32>
    %233 = arith.mulf %231, %232 : vector<16x32xf32>
    %234 = vector.broadcast %211 : vector<1x32xf32> to vector<16x32xf32>
    %235 = arith.addf %233, %234 : vector<16x32xf32>
    %c1_101 = arith.constant 1 : index
    %c0_102 = arith.constant 0 : index
    %c0_103 = arith.constant 0 : index
    %236 = vector.load %arg10[%c1_101, %c0_102, %c0_103] : memref<2x32x64xf32, #tpu.memory_space<vmem>>, vector<1x32x64xf32>
    %237 = vector.shape_cast %236 : vector<1x32x64xf32> to vector<32x64xf32>
    %cst_104 = arith.constant dense<0.000000e+00> : vector<16x64xf32>
    %238 = tpu.matmul %235, %237, %cst_104 {dimension_numbers = #tpu.dot_dimension_numbers<[1], [0], [0], [1], [0, 0, 1, 1], [], []>} : vector<16x32xf32>, vector<32x64xf32>, vector<16x64xf32> -> vector<16x64xf32>
    %c1_105 = arith.constant 1 : index
    %c0_106 = arith.constant 0 : index
    %c0_107 = arith.constant 0 : index
    %239 = vector.load %arg11[%c1_105, %c0_106, %c0_107] : memref<2x1x64xf32, #tpu.memory_space<vmem>>, vector<1x1x64xf32>
    %240 = vector.shape_cast %239 : vector<1x1x64xf32> to vector<1x64xf32>
    %241 = vector.broadcast %240 : vector<1x64xf32> to vector<16x64xf32>
    %242 = arith.addf %238, %241 : vector<16x64xf32>
    %cst_108 = arith.constant 5.000000e-01 : f32
    %243 = vector.broadcast %cst_108 : f32 to vector<16x64xf32>
    %244 = arith.mulf %243, %242 : vector<16x64xf32>
    %cst_109 = arith.constant 4.471500e-02 : f32
    %245 = vector.broadcast %cst_109 : f32 to vector<16x64xf32>
    %246 = arith.mulf %245, %242 : vector<16x64xf32>
    %247 = arith.mulf %246, %242 : vector<16x64xf32>
    %248 = arith.mulf %247, %242 : vector<16x64xf32>
    %249 = arith.addf %242, %248 : vector<16x64xf32>
    %cst_110 = arith.constant 0.797884583 : f32
    %250 = vector.broadcast %cst_110 : f32 to vector<16x64xf32>
    %251 = arith.mulf %250, %249 : vector<16x64xf32>
    %252 = math.tanh %251 : vector<16x64xf32>
    %cst_111 = arith.constant 1.000000e+00 : f32
    %253 = vector.broadcast %cst_111 : f32 to vector<16x64xf32>
    %254 = arith.addf %253, %252 : vector<16x64xf32>
    %255 = arith.mulf %244, %254 : vector<16x64xf32>
    %c1_112 = arith.constant 1 : index
    %c0_113 = arith.constant 0 : index
    %c0_114 = arith.constant 0 : index
    %256 = vector.load %arg12[%c1_112, %c0_113, %c0_114] : memref<2x64x32xf32, #tpu.memory_space<vmem>>, vector<1x64x32xf32>
    %257 = vector.shape_cast %256 : vector<1x64x32xf32> to vector<64x32xf32>
    %cst_115 = arith.constant dense<0.000000e+00> : vector<16x32xf32>
    %258 = tpu.matmul %255, %257, %cst_115 {dimension_numbers = #tpu.dot_dimension_numbers<[1], [0], [0], [1], [0, 0, 1, 1], [], []>} : vector<16x64xf32>, vector<64x32xf32>, vector<16x32xf32> -> vector<16x32xf32>
    %c1_116 = arith.constant 1 : index
    %c0_117 = arith.constant 0 : index
    %c0_118 = arith.constant 0 : index
    %259 = vector.load %arg13[%c1_116, %c0_117, %c0_118] : memref<2x1x32xf32, #tpu.memory_space<vmem>>, vector<1x1x32xf32>
    %260 = vector.shape_cast %259 : vector<1x1x32xf32> to vector<1x32xf32>
    %261 = vector.broadcast %260 : vector<1x32xf32> to vector<16x32xf32>
    %262 = arith.addf %258, %261 : vector<16x32xf32>
    %263 = arith.addf %262, %235 : vector<16x32xf32>
    %c1_119 = arith.constant 1 : index
    %c0_120 = arith.constant 0 : index
    %c0_121 = arith.constant 0 : index
    %264 = vector.load %arg14[%c1_119, %c0_120, %c0_121] : memref<2x1x32xf32, #tpu.memory_space<vmem>>, vector<1x1x32xf32>
    %265 = vector.shape_cast %264 : vector<1x1x32xf32> to vector<1x32xf32>
    %c1_122 = arith.constant 1 : index
    %c0_123 = arith.constant 0 : index
    %c0_124 = arith.constant 0 : index
    %266 = vector.load %arg15[%c1_122, %c0_123, %c0_124] : memref<2x1x32xf32, #tpu.memory_space<vmem>>, vector<1x1x32xf32>
    %267 = vector.shape_cast %266 : vector<1x1x32xf32> to vector<1x32xf32>
    %cst_125 = arith.constant dense<0.000000e+00> : vector<16xf32>
    %268 = vector.multi_reduction <add>, %263, %cst_125 [1] : vector<16x32xf32> to vector<16xf32>
    %269 = vector.shape_cast %268 : vector<16xf32> to vector<16x1xf32>
    %cst_126 = arith.constant 3.200000e+01 : f32
    %270 = vector.broadcast %cst_126 : f32 to vector<16x1xf32>
    %271 = arith.divf %269, %270 : vector<16x1xf32>
    %272 = arith.mulf %263, %263 : vector<16x32xf32>
    %cst_127 = arith.constant dense<0.000000e+00> : vector<16xf32>
    %273 = vector.multi_reduction <add>, %272, %cst_127 [1] : vector<16x32xf32> to vector<16xf32>
    %274 = vector.shape_cast %273 : vector<16xf32> to vector<16x1xf32>
    %cst_128 = arith.constant 3.200000e+01 : f32
    %275 = vector.broadcast %cst_128 : f32 to vector<16x1xf32>
    %276 = arith.divf %274, %275 : vector<16x1xf32>
    %277 = arith.mulf %271, %271 : vector<16x1xf32>
    %278 = arith.subf %276, %277 : vector<16x1xf32>
    %cst_129 = arith.constant 0.000000e+00 : f32
    %279 = vector.broadcast %cst_129 : f32 to vector<16x1xf32>
    %280 = arith.maximumf %278, %279 : vector<16x1xf32>
    %281 = vector.broadcast %271 : vector<16x1xf32> to vector<16x32xf32>
    %282 = arith.subf %263, %281 : vector<16x32xf32>
    %cst_130 = arith.constant 9.99999996E-13 : f32
    %283 = vector.broadcast %cst_130 : f32 to vector<16x1xf32>
    %284 = arith.addf %280, %283 : vector<16x1xf32>
    %285 = math.rsqrt %284 : vector<16x1xf32>
    %286 = vector.broadcast %285 : vector<16x1xf32> to vector<16x32xf32>
    %287 = arith.mulf %282, %286 : vector<16x32xf32>
    %288 = vector.broadcast %265 : vector<1x32xf32> to vector<16x32xf32>
    %289 = arith.mulf %287, %288 : vector<16x32xf32>
    %290 = vector.broadcast %267 : vector<1x32xf32> to vector<16x32xf32>
    %291 = arith.addf %289, %290 : vector<16x32xf32>
    %292 = vector.extract_strided_slice %291 {offsets = [0, 0], sizes = [1, 32], strides = [1, 1]} : vector<16x32xf32> to vector<1x32xf32>
    %293 = vector.extract_strided_slice %291 {offsets = [8, 0], sizes = [1, 32], strides = [1, 1]} : vector<16x32xf32> to vector<1x32xf32>
    %294 = tpu.concatenate %292, %293 in 0 : vector<1x32xf32>, vector<1x32xf32> -> vector<2x32xf32>
    %c0_131 = arith.constant 0 : index
    %c0_132 = arith.constant 0 : index
    %295 = vector.load %arg16[%c0_131, %c0_132] : memref<32x128xf32, #tpu.memory_space<vmem>>, vector<32x128xf32>
    %cst_133 = arith.constant dense<0.000000e+00> : vector<2x128xf32>
    %296 = tpu.matmul %294, %295, %cst_133 {dimension_numbers = #tpu.dot_dimension_numbers<[1], [0], [0], [1], [0, 0, 1, 1], [], []>} : vector<2x32xf32>, vector<32x128xf32>, vector<2x128xf32> -> vector<2x128xf32>
    %c0_134 = arith.constant 0 : index
    %c0_135 = arith.constant 0 : index
    %297 = vector.load %arg17[%c0_134, %c0_135] : memref<1x128xf32, #tpu.memory_space<vmem>>, vector<1x128xf32>
    %298 = vector.broadcast %297 : vector<1x128xf32> to vector<2x128xf32>
    %299 = arith.addf %296, %298 : vector<2x128xf32>
    %c0_136 = arith.constant 0 : index
    %c0_137 = arith.constant 0 : index
    %300 = vector.load %arg18[%c0_136, %c0_137] : memref<2x128xf32, #tpu.memory_space<vmem>>, vector<2x128xf32>
    tpu.vector_store %arg18[%c0_136, %c0_137], %299 {strides = array<i32>} : memref<2x128xf32, #tpu.memory_space<vmem>>, vector<2x128xf32>,
    return
  }
}

</mosaic_0001>

<llo_original>
// kernel: tpu_custom_call.1
$region0: #{tpu_custom_call.1}
  #allocation0 [shape = 'u32[]', space=smem, size = 0x4, offset = 0x4, fixed_abs, tag = 'smem constant byte address 0x4 - core index']
  #allocation1 [shape = 'u32[144,128]{1,0:T(1,128)}', space=vmem, size = 0x12000, scoped, tag = 'internal scratch']
  %s0 = inlined_call_operand.hbm [shape: f32[16,32], index: 0, kind: input, shape index: {}]
  %s1 = inlined_call_operand.vmem [shape: f32[64,64], index: 1, kind: input, shape index: {}]
  %s2 = inlined_call_operand.hbm [shape: f32[1,32], index: 2, kind: input, shape index: {}]
  %s3 = inlined_call_operand.hbm [shape: f32[1,32], index: 3, kind: input, shape index: {}]
  %s4 = inlined_call_operand.vmem [shape: f32[2,32,96], index: 4, kind: input, shape index: {}]
  %s5 = inlined_call_operand.vmem [shape: f32[2,1,96], index: 5, kind: input, shape index: {}]
  %s6 = inlined_call_operand.vmem [shape: f32[2,32,32], index: 6, kind: input, shape index: {}]
  %s7 = inlined_call_operand.hbm [shape: f32[2,1,32], index: 7, kind: input, shape index: {}]
  %s8 = inlined_call_operand.hbm [shape: f32[2,1,32], index: 8, kind: input, shape index: {}]
  %s9 = inlined_call_operand.hbm [shape: f32[2,1,32], index: 9, kind: input, shape index: {}]
  %s10 = inlined_call_operand.hbm [shape: f32[2,32,64], index: 10, kind: input, shape index: {}]
  %s11 = inlined_call_operand.vmem [shape: f32[2,1,64], index: 11, kind: input, shape index: {}]
  %s12 = inlined_call_operand.vmem [shape: f32[2,64,32], index: 12, kind: input, shape index: {}]
  %s13 = inlined_call_operand.vmem [shape: f32[2,1,32], index: 13, kind: input, shape index: {}]
  %s14 = inlined_call_operand.vmem [shape: f32[2,1,32], index: 14, kind: input, shape index: {}]
  %s15 = inlined_call_operand.vmem [shape: f32[2,1,32], index: 15, kind: input, shape index: {}]
  %s16 = inlined_call_operand.vmem [shape: f32[32,128], index: 16, kind: input, shape index: {}]
  %s17 = inlined_call_operand.vmem [shape: f32[1,128], index: 17, kind: input, shape index: {}]
  %s18 = inlined_call_operand.hbm [shape: f32[2,128], index: 18, kind: output, shape index: {}]
  %s19 = sld [smem:[#allocation0]]
  $region110: #{tpu_custom_call.1} parent=0
    _
  %s21 = ssub.s32 1, %s19
  %s22 = scalar_select 0, %s21, %s19
  $region1: #{tpu_custom_call.1} parent=0
    #allocation2 [shape = 'u8[8192]{0}', space=vmem, size = 0x2000, scoped, tag = 'input window, operand 0, single buffered']
    #allocation3 [shape = 's32[1]{0}', space=sflag, size = 0x4, scoped, tag = 'scoped memory for tpu_custom_call.1']
    #allocation4 [shape = 's32[1]{0}', space=sflag, size = 0x4, scoped, tag = 'scoped memory for tpu_custom_call.1']
    #allocation5 [shape = 'u8[512]{0}', space=vmem, size = 0x400, scoped, tag = 'input window, operand 2, single buffered']
    #allocation6 [shape = 's32[1]{0}', space=sflag, size = 0x4, scoped, tag = 'scoped memory for tpu_custom_call.1']
    #allocation7 [shape = 'u8[512]{0}', space=vmem, size = 0x400, scoped, tag = 'input window, operand 3, single buffered']
    #allocation8 [shape = 'u8[1024]{0}', space=vmem, size = 0x400, scoped, tag = 'input window, operand 7, single buffered']
    #allocation9 [shape = 's32[1]{0}', space=sflag, size = 0x4, scoped, tag = 'scoped memory for tpu_custom_call.1']
    #allocation10 [shape = 'u8[1024]{0}', space=vmem, size = 0x400, scoped, tag = 'input window, operand 8, single buffered']
    #allocation11 [shape = 'u8[1024]{0}', space=vmem, size = 0x400, scoped, tag = 'input window, operand 9, single buffered']
    #allocation12 [shape = 's32[1]{0}', space=sflag, size = 0x4, scoped, tag = 'scoped memory for tpu_custom_call.1']
    #allocation13 [shape = 'u8[32768]{0}', space=vmem, size = 0x8000, scoped, tag = 'input window, operand 10, single buffered']
    #allocation14 [shape = 'u8[1024]{0}', space=vmem, size = 0x400, scoped, tag = 'output window, operand 0, single buffered']
    %23 = vsyncpa [#allocation3], 0
    %24 = vsyncpa [#allocation6], 0
    %25 = vsyncpa [#allocation9], 0
    %26 = vsyncpa [#allocation12], 0
    %27 = vsyncpa [#allocation4], 0
    // Predicated region
    $region2: #{tpu_custom_call.1} parent=1 // pred_check
      _
    $region3: #{tpu_custom_call.1} parent=1 // pred_check_branch
      %29 = sbr.rel (0) target = $region5
    $region4: #{tpu_custom_call.1} parent=1 // pred_region
      %s31 = ssub.s32 256, 256
      %32 = vsyncadd [#allocation3], %s31
      %s33 = sshll.u32 [#allocation2], 4
      %s34 = int_to_ptr.vmem [resolvable:$true] %s33
      %39 = dma.hbm_to_vmem [thread:$0]  %s0, 256, %s34, [#allocation3], 128, 128, 8
    $region5: #{tpu_custom_call.1} parent=1 // pred_fallthru
      _
    // Predicated region
    $region6: #{tpu_custom_call.1} parent=1 // pred_check
      _
    $region7: #{tpu_custom_call.1} parent=1 // pred_check_branch
      %41 = sbr.rel (0) target = $region9
    $region8: #{tpu_custom_call.1} parent=1 // pred_region
      _
    $region9: #{tpu_custom_call.1} parent=1 // pred_fallthru
      _
    // Predicated region
    $region10: #{tpu_custom_call.1} parent=1 // pred_check
      _
    $region11: #{tpu_custom_call.1} parent=1 // pred_check_branch
      %43 = sbr.rel (0) target = $region13
    $region12: #{tpu_custom_call.1} parent=1 // pred_region
      %s45 = ssub.s32 16, 16
      %46 = vsyncadd [#allocation6], %s45
      %s48 = sshll.u32 [#allocation5], 4
      %s49 = int_to_ptr.vmem [resolvable:$true] %s48
      %51 = dma.hbm_to_vmem [thread:$0]  %s2, 16, %s49, [#allocation6]
    $region13: #{tpu_custom_call.1} parent=1 // pred_fallthru
      _
    // Predicated region
    $region14: #{tpu_custom_call.1} parent=1 // pred_check
      _
    $region15: #{tpu_custom_call.1} parent=1 // pred_check_branch
      %53 = sbr.rel (0) target = $region17
    $region16: #{tpu_custom_call.1} parent=1 // pred_region
      %s55 = ssub.s32 16, 16
      %56 = vsyncadd [#allocation6], %s55
      %s58 = sshll.u32 [#allocation7], 4
      %s59 = int_to_ptr.vmem [resolvable:$true] %s58
      %61 = dma.hbm_to_vmem [thread:$0]  %s3, 16, %s59, [#allocation6]
    $region17: #{tpu_custom_call.1} parent=1 // pred_fallthru
      _
    // Predicated region
    $region18: #{tpu_custom_call.1} parent=1 // pred_check
      _
    $region19: #{tpu_custom_call.1} parent=1 // pred_check_branch
      %63 = sbr.rel (0) target = $region21
    $region20: #{tpu_custom_call.1} parent=1 // pred_region
      _
    $region21: #{tpu_custom_call.1} parent=1 // pred_fallthru
      _
    // Predicated region
    $region22: #{tpu_custom_call.1} parent=1 // pred_check
      _
    $region23: #{tpu_custom_call.1} parent=1 // pred_check_branch
      %65 = sbr.rel (0) target = $region25
    $region24: #{tpu_custom_call.1} parent=1 // pred_region
      _
    $region25: #{tpu_custom_call.1} parent=1 // pred_fallthru
      _
    // Predicated region
    $region26: #{tpu_custom_call.1} parent=1 // pred_check
      _
    $region27: #{tpu_custom_call.1} parent=1 // pred_check_branch
      %67 = sbr.rel (0) target = $region29
    $region28: #{tpu_custom_call.1} parent=1 // pred_region
      _
    $region29: #{tpu_custom_call.1} parent=1 // pred_fallthru
      _
    // Predicated region
    $region30: #{tpu_custom_call.1} parent=1 // pred_check
      _
    $region31: #{tpu_custom_call.1} parent=1 // pred_check_branch
      %69 = sbr.rel (0) target = $region33
    $region32: #{tpu_custom_call.1} parent=1 // pred_region
      %s71 = ssub.s32 32, 32
      %72 = vsyncadd [#allocation9], %s71
      %s73 = sshll.u32 [#allocation8], 4
      %s74 = int_to_ptr.vmem [resolvable:$true] %s73
      %79 = dma.hbm_to_vmem [thread:$0]  %s7, 32, %s74, [#allocation9], 16, 16, 1
    $region33: #{tpu_custom_call.1} parent=1 // pred_fallthru
      _
    // Predicated region
    $region34: #{tpu_custom_call.1} parent=1 // pred_check
      _
    $region35: #{tpu_custom_call.1} parent=1 // pred_check_branch
      %81 = sbr.rel (0) target = $region37
    $region36: #{tpu_custom_call.1} parent=1 // pred_region
      %s83 = ssub.s32 32, 32
      %84 = vsyncadd [#allocation9], %s83
      %s85 = sshll.u32 [#allocation10], 4
      %s86 = int_to_ptr.vmem [resolvable:$true] %s85
      %91 = dma.hbm_to_vmem [thread:$0]  %s8, 32, %s86, [#allocation9], 16, 16, 1
    $region37: #{tpu_custom_call.1} parent=1 // pred_fallthru
      _
    // Predicated region
    $region38: #{tpu_custom_call.1} parent=1 // pred_check
      _
    $region39: #{tpu_custom_call.1} parent=1 // pred_check_branch
      %93 = sbr.rel (0) target = $region41
    $region40: #{tpu_custom_call.1} parent=1 // pred_region
      %s95 = ssub.s32 32, 32
      %96 = vsyncadd [#allocation12], %s95
      %s97 = sshll.u32 [#allocation11], 4
      %s98 = int_to_ptr.vmem [resolvable:$true] %s97
      %103 = dma.hbm_to_vmem [thread:$0]  %s9, 32, %s98, [#allocation12], 16, 16, 1
    $region41: #{tpu_custom_call.1} parent=1 // pred_fallthru
      _
    // Predicated region
    $region42: #{tpu_custom_call.1} parent=1 // pred_check
      _
    $region43: #{tpu_custom_call.1} parent=1 // pred_check_branch
      %105 = sbr.rel (0) target = $region45
    $region44: #{tpu_custom_call.1} parent=1 // pred_region
      %s107 = ssub.s32 1024, 1024
      %108 = vsyncadd [#allocation12], %s107
      %s109 = sshll.u32 [#allocation13], 4
      %s110 = int_to_ptr.vmem [resolvable:$true] %s109
      %115 = dma.hbm_to_vmem [thread:$0]  %s10, 1024, %s110, [#allocation12], 128, 128, 8
    $region45: #{tpu_custom_call.1} parent=1 // pred_fallthru
      _
    // Predicated region
    $region46: #{tpu_custom_call.1} parent=1 // pred_check
      _
    $region47: #{tpu_custom_call.1} parent=1 // pred_check_branch
      %117 = sbr.rel (0) target = $region49
    $region48: #{tpu_custom_call.1} parent=1 // pred_region
      _
    $region49: #{tpu_custom_call.1} parent=1 // pred_fallthru
      _
    // Predicated region
    $region50: #{tpu_custom_call.1} parent=1 // pred_check
      _
    $region51: #{tpu_custom_call.1} parent=1 // pred_check_branch
      %119 = sbr.rel (0) target = $region53
    $region52: #{tpu_custom_call.1} parent=1 // pred_region
      _
    $region53: #{tpu_custom_call.1} parent=1 // pred_fallthru
      _
    // Predicated region
    $region54: #{tpu_custom_call.1} parent=1 // pred_check
      _
    $region55: #{tpu_custom_call.1} parent=1 // pred_check_branch
      %121 = sbr.rel (0) target = $region57
    $region56: #{tpu_custom_call.1} parent=1 // pred_region
      _
    $region57: #{tpu_custom_call.1} parent=1 // pred_fallthru
      _
    // Predicated region
    $region58: #{tpu_custom_call.1} parent=1 // pred_check
      _
    $region59: #{tpu_custom_call.1} parent=1 // pred_check_branch
      %123 = sbr.rel (0) target = $region61
    $region60: #{tpu_custom_call.1} parent=1 // pred_region
      _
    $region61: #{tpu_custom_call.1} parent=1 // pred_fallthru
      _
    // Predicated region
    $region62: #{tpu_custom_call.1} parent=1 // pred_check
      _
    $region63: #{tpu_custom_call.1} parent=1 // pred_check_branch
      %125 = sbr.rel (0) target = $region65
    $region64: #{tpu_custom_call.1} parent=1 // pred_region
      _
    $region65: #{tpu_custom_call.1} parent=1 // pred_fallthru
      _
    // Predicated region
    $region66: #{tpu_custom_call.1} parent=1 // pred_check
      _
    $region67: #{tpu_custom_call.1} parent=1 // pred_check_branch
      %127 = sbr.rel (0) target = $region69
    $region68: #{tpu_custom_call.1} parent=1 // pred_region
      _
    $region69: #{tpu_custom_call.1} parent=1 // pred_fallthru
      _
    // Predicated region
    $region70: #{tpu_custom_call.1} parent=1 // pred_check
      _
    $region71: #{tpu_custom_call.1} parent=1 // pred_check_branch
      %129 = sbr.rel (0) target = $region73
    $region72: #{tpu_custom_call.1} parent=1 // pred_region
      _
    $region73: #{tpu_custom_call.1} parent=1 // pred_fallthru
      _
    // Predicated region
    $region74: #{tpu_custom_call.1} parent=1 // pred_check
      _
    $region75: #{tpu_custom_call.1} parent=1 // pred_check_branch
      %131 = sbr.rel (0) target = $region77
    $region76: #{tpu_custom_call.1} parent=1 // pred_region
      %132 = dma.done [#allocation3], 256
    $region77: #{tpu_custom_call.1} parent=1 // pred_fallthru
      _
    // Predicated region
    $region78: #{tpu_custom_call.1} parent=1 // pred_check
      _
    $region79: #{tpu_custom_call.1} parent=1 // pred_check_branch
      %134 = sbr.rel (0) target = $region81
    $region80: #{tpu_custom_call.1} parent=1 // pred_region
      %135 = dma.done [#allocation6], 16
    $region81: #{tpu_custom_call.1} parent=1 // pred_fallthru
      _
    // Predicated region
    $region82: #{tpu_custom_call.1} parent=1 // pred_check
      _
    $region83: #{tpu_custom_call.1} parent=1 // pred_check_branch
      %137 = sbr.rel (0) target = $region85
    $region84: #{tpu_custom_call.1} parent=1 // pred_region
      %138 = dma.done [#allocation6], 16
    $region85: #{tpu_custom_call.1} parent=1 // pred_fallthru
      _
    // Predicated region
    $region86: #{tpu_custom_call.1} parent=1 // pred_check
      _
    $region87: #{tpu_custom_call.1} parent=1 // pred_check_branch
      %140 = sbr.rel (0) target = $region89
    $region88: #{tpu_custom_call.1} parent=1 // pred_region
      %141 = dma.done [#allocation9], 32
    $region89: #{tpu_custom_call.1} parent=1 // pred_fallthru
      _
    // Predicated region
    $region90: #{tpu_custom_call.1} parent=1 // pred_check
      _
    $region91: #{tpu_custom_call.1} parent=1 // pred_check_branch
      %143 = sbr.rel (0) target = $region93
    $region92: #{tpu_custom_call.1} parent=1 // pred_region
      %144 = dma.done [#allocation9], 32
    $region93: #{tpu_custom_call.1} parent=1 // pred_fallthru
      _
    // Predicated region
    $region94: #{tpu_custom_call.1} parent=1 // pred_check
      _
    $region95: #{tpu_custom_call.1} parent=1 // pred_check_branch
      %146 = sbr.rel (0) target = $region97
    $region96: #{tpu_custom_call.1} parent=1 // pred_region
      %147 = dma.done [#allocation12], 32
    $region97: #{tpu_custom_call.1} parent=1 // pred_fallthru
      _
    // Predicated region
    $region98: #{tpu_custom_call.1} parent=1 // pred_check
      _
    $region99: #{tpu_custom_call.1} parent=1 // pred_check_branch
      %149 = sbr.rel (0) target = $region101
    $region100: #{tpu_custom_call.1} parent=1 // pred_region
      %150 = dma.done [#allocation12], 1024
    $region101: #{tpu_custom_call.1} parent=1 // pred_fallthru
      _
    %v151 = vld [vmem:[#allocation2] sm:$0xff]
    %v152 = vld [vmem:[#allocation2 + $0x8] sm:$0xff]
    %v153 = vld [vmem:[#allocation5] sm:$0x1]
    %v154 = vld [vmem:[#allocation7] sm:$0x1]
    %vm155 = vcmask 261120
    %v156 = vsel %vm155, %v151, 0.0
    %157 = vadd.xlane.f32.xlu0 %v156
    %v158 = vpop.xlane.xlu0 %157
    %v159 = vsel %vm155, %v152, 0.0
    %160 = vadd.xlane.f32.xlu0 %v159
    %v161 = vpop.xlane.xlu0 %160
    %v162 = vrcp.pop 32.0
    %v163 = vmul.f32 %v158, %v162
    %v164 = vmul.f32 %v161, %v162
    %v165 = vmul.f32 %v151, %v151
    %v166 = vmul.f32 %v152, %v152
    %v167 = vsel %vm155, %v165, 0.0
    %168 = vadd.xlane.f32.xlu0 %v167
    %v169 = vpop.xlane.xlu0 %168
    %v170 = vsel %vm155, %v166, 0.0
    %171 = vadd.xlane.f32.xlu0 %v170
    %v172 = vpop.xlane.xlu0 %171
    %v173 = vmul.f32 %v169, %v162
    %v174 = vmul.f32 %v172, %v162
    %v175 = vmul.f32 %v163, %v163
    %v176 = vmul.f32 %v164, %v164
    %v177 = vsub.f32 %v173, %v175
    %v178 = vsub.f32 %v174, %v176
    %v179 = vmax.f32 %v177, 0.0
    %v180 = vmax.f32 %v178, 0.0
    %v181 = vsub.f32 %v151, %v163
    %v182 = vsub.f32 %v152, %v164
    %v183 = vadd.f32 %v179, 1e-12
    %v184 = vadd.f32 %v180, 1e-12
    %v185 = vrsqrt.pop %v183
    %v186 = vrsqrt.pop %v184
    %v187 = vmul.f32 %v181, %v185
    %v188 = vmul.f32 %v182, %v186
    %v190 = vlaneseq
    %v191 = vshrl.u32 %v190, 7
    %v192 = vsub.s32 0, %v191
    %v193 = vrot.slane %v153, %v192
    %v195 = vmul.f32 %v187, %v193
    %v196 = vmul.f32 %v188, %v193
    %v198 = vlaneseq
    %v199 = vshrl.u32 %v198, 7
    %v200 = vsub.s32 0, %v199
    %v201 = vrot.slane %v154, %v200
    %v203 = vadd.f32 %v195, %v201
    %v204 = vadd.f32 %v196, %v201
    %v205 = vld [vmem:[%s1] sm:$0xff]
    %v206 = vld [vmem:[%s1 + $0x8] sm:$0xff]
    %v207 = vld [vmem:[%s1 + $0x10] sm:$0xff]
    %v208 = vld [vmem:[%s1 + $0x18] sm:$0xff]
    %v209 = vld [vmem:[%s1 + $0x20] sm:$0xff]
    %v210 = vld [vmem:[%s1 + $0x28] sm:$0xff]
    %v211 = vld [vmem:[%s1 + $0x30] sm:$0xff]
    %v212 = vld [vmem:[%s1 + $0x38] sm:$0xff]
    %v213 = vld [vmem:[%s4] sm:$0xff]
    %v214 = vld [vmem:[%s4 + $0x8] sm:$0xff]
    %v215 = vld [vmem:[%s4 + $0x10] sm:$0xff]
    %v216 = vld [vmem:[%s4 + $0x18] sm:$0xff]
    %v217 = vld [vmem:[%s5] sm:$0x1]
    %v219 = vlaneseq
    %v220 = vshrl.u32 %v219, 7
    %v221 = vsub.s32 0, %v220
    %v222 = vrot.slane %v217, %v221
    %v225 = vsel %vm155, %v203, 0
    %v228 = vsel %vm155, %v204, 0
    %230 = vmatprep.subr.mxu0 0.0
    %231 = vmatpush1.msra.mxu0 %v213
    %232 = vmatprep.subr.mxu0 0.0
    %233 = vmatpush1.msra.mxu0 %v214
    %234 = vmatprep.subr.mxu0 0.0
    %235 = vmatpush1.msra.mxu0 %v215
    %236 = vmatprep.subr.mxu0 0.0
    %237 = vmatpush1.msra.mxu0 %v216
    %238 = vmatprep.subr.mxu0 0.0
    %239 = vmatpush1.msra.mxu0 0.0
    %240 = vmatprep.subr.mxu0 0.0
    %241 = vmatpush1.msra.mxu0 0.0
    %242 = vmatprep.subr.mxu0 0.0
    %243 = vmatpush1.msra.mxu0 0.0
    %244 = vmatprep.subr.mxu0 0.0
    %245 = vmatpush1.msra.mxu0 0.0
    %246 = vmatprep.subr.mxu0 0.0
    %247 = vmatpush1.msra.mxu0 0.0
    %248 = vmatprep.subr.mxu0 0.0
    %249 = vmatpush1.msra.mxu0 0.0
    %250 = vmatprep.subr.mxu0 0.0
    %251 = vmatpush1.msra.mxu0 0.0
    %252 = vmatprep.subr.mxu0 0.0
    %253 = vmatpush1.msra.mxu0 0.0
    %254 = vmatprep.subr.mxu0 0.0
    %255 = vmatpush1.msra.mxu0 0.0
    %256 = vmatprep.subr.mxu0 0.0
    %257 = vmatpush1.msra.mxu0 0.0
    %258 = vmatprep.subr.mxu0 0.0
    %259 = vmatpush1.msra.mxu0 0.0
    %260 = vmatprep.subr.mxu0 0.0
    %261 = vmatpush1.msra.mxu0 0.0
    %262 = vmatprep.subr.mxu0 0.0
    %263 = vmatpush1.msra.mxu0 0.0
    %264 = vmatprep.subr.mxu0 0.0
    %265 = vmatpush1.msra.mxu0 0.0
    %266 = vmatprep.subr.mxu0 0.0
    %267 = vmatpush1.msra.mxu0 0.0
    %268 = vmatprep.subr.mxu0 0.0
    %269 = vmatpush1.msra.mxu0 0.0
    %270 = vmatprep.subr.mxu0 0.0
    %271 = vmatpush1.msra.mxu0 0.0
    %272 = vmatprep.subr.mxu0 0.0
    %273 = vmatpush1.msra.mxu0 0.0
    %274 = vmatprep.subr.mxu0 0.0
    %275 = vmatpush1.msra.mxu0 0.0
    %276 = vmatprep.subr.mxu0 0.0
    %277 = vmatpush1.msra.mxu0 0.0
    %278 = vmatprep.subr.mxu0 0.0
    %279 = vmatpush1.msra.mxu0 0.0
    %280 = vmatprep.subr.mxu0 0.0
    %281 = vmatpush1.msra.mxu0 0.0
    %282 = vmatprep.subr.mxu0 0.0
    %283 = vmatpush1.msra.mxu0 0.0
    %284 = vmatprep.subr.mxu0 0.0
    %285 = vmatpush1.msra.mxu0 0.0
    %286 = vmatprep.subr.mxu0 0.0
    %287 = vmatpush1.msra.mxu0 0.0
    %288 = vmatprep.subr.mxu0 0.0
    %289 = vmatpush1.msra.mxu0 0.0
    %290 = vmatprep.subr.mxu0 0.0
    %291 = vmatpush1.msra.mxu0 0.0
    %292 = vmatprep.subr.mxu0 0.0
    %293 = vmatpush1.msra.mxu0 0.0
    %294 = vmatprep.mubr.f32.mxu0 0.0
    %295 = vmatmul.mubr.f32.gmra.mrb[0].mxu0 %v225
    %v296 = vpop.f32.mrb[0].mxu0
    %v297 = vadd.f32 %v222, %v296
    %v298 = vpop.f32.mrb[0].mxu0
    %299 = vmatprep.mubr.f32.mxu0 0.0
    %300 = vmatmul.mubr.f32.gmra.mrb[0].mxu0 %v228
    %v301 = vpop.f32.mrb[0].mxu0
    %v302 = vadd.f32 %v222, %v301
    %v303 = vpop.f32.mrb[0].mxu0
    %304 = vdwg.mxu0
    %307 = vrot.lane.b32.xlu0 %v297, 120
    %v308 = vpop.permute.xlu0 %307
    %309 = vrot.lane.b32.xlu0 %v302, 120
    %v310 = vpop.permute.xlu0 %309
    %311 = vrot.lane.b32.xlu0 %v297, 112
    %v312 = vpop.permute.xlu0 %311
    %313 = vrot.lane.b32.xlu0 %v302, 112
    %v314 = vpop.permute.xlu0 %313
    %315 = vrot.lane.b32.xlu0 %v297, 104
    %v316 = vpop.permute.xlu0 %315
    %317 = vrot.lane.b32.xlu0 %v302, 104
    %v318 = vpop.permute.xlu0 %317
    %319 = vrot.lane.b32.xlu0 %v297, 96
    %v320 = vpop.permute.xlu0 %319
    %321 = vrot.lane.b32.xlu0 %v302, 96
    %v322 = vpop.permute.xlu0 %321
    %323 = vrot.lane.b32.xlu0 %v308, 96
    %v324 = vpop.permute.xlu0 %323
    %325 = vrot.lane.b32.xlu0 %v310, 96
    %v326 = vpop.permute.xlu0 %325
    %327 = vrot.lane.b32.xlu0 %v312, 96
    %v328 = vpop.permute.xlu0 %327
    %329 = vrot.lane.b32.xlu0 %v314, 96
    %v330 = vpop.permute.xlu0 %329
    %331 = vrot.lane.b32.xlu0 %v316, 96
    %v332 = vpop.permute.xlu0 %331
    %333 = vrot.lane.b32.xlu0 %v318, 96
    %v334 = vpop.permute.xlu0 %333
    %vm335 = vcmask 64512
    %v336 = vsel %vm335, %v297, 0
    %v338 = vsel %vm335, %v302, 0
    %v340 = vsel %vm335, %v308, 0
    %v342 = vsel %vm335, %v310, 0
    %v344 = vsel %vm335, %v312, 0
    %v346 = vsel %vm335, %v314, 0
    %v348 = vsel %vm335, %v316, 0
    %v350 = vsel %vm335, %v318, 0
    %v352 = vsel %vm335, %v320, 0
    %v354 = vsel %vm335, %v322, 0
    %v356 = vsel %vm335, %v324, 0
    %v358 = vsel %vm335, %v326, 0
    %v360 = vsel %vm335, %v328, 0
    %v362 = vsel %vm335, %v330, 0
    %v364 = vsel %vm335, %v332, 0
    %v366 = vsel %vm335, %v334, 0
    %368 = vmatprep.subr.mxu0 0.0
    %369 = vmatpush1.xpose.msra.mxu0 %v352
    %370 = vmatprep.subr.mxu0 0.0
    %371 = vmatpush1.xpose.msra.mxu0 %v354
    %372 = vmatprep.subr.mxu0 0.0
    %373 = vmatpush1.xpose.msra.mxu0 %v356
    %374 = vmatprep.subr.mxu0 0.0
    %375 = vmatpush1.xpose.msra.mxu0 %v358
    %376 = vmatprep.subr.mxu0 0.0
    %377 = vmatpush1.xpose.msra.mxu0 %v360
    %378 = vmatprep.subr.mxu0 0.0
    %379 = vmatpush1.xpose.msra.mxu0 %v362
    %380 = vmatprep.subr.mxu0 0.0
    %381 = vmatpush1.xpose.msra.mxu0 %v364
    %382 = vmatprep.subr.mxu0 0.0
    %383 = vmatpush1.xpose.msra.mxu0 %v366
    %384 = vmatprep.subr.mxu0 0.0
    %385 = vmatpush1.xpose.msra.mxu0 0.0
    %386 = vmatprep.subr.mxu0 0.0
    %387 = vmatpush1.xpose.msra.mxu0 0.0
    %388 = vmatprep.subr.mxu0 0.0
    %389 = vmatpush1.xpose.msra.mxu0 0.0
    %390 = vmatprep.subr.mxu0 0.0
    %391 = vmatpush1.xpose.msra.mxu0 0.0
    %392 = vmatprep.subr.mxu0 0.0
    %393 = vmatpush1.xpose.msra.mxu0 0.0
    %394 = vmatprep.subr.mxu0 0.0
    %395 = vmatpush1.xpose.msra.mxu0 0.0
    %396 = vmatprep.subr.mxu0 0.0
    %397 = vmatpush1.xpose.msra.mxu0 0.0
    %398 = vmatprep.subr.mxu0 0.0
    %399 = vmatpush1.xpose.msra.mxu0 0.0
    %400 = vmatprep.subr.mxu0 0.0
    %401 = vmatpush1.xpose.msra.mxu0 0.0
    %402 = vmatprep.subr.mxu0 0.0
    %403 = vmatpush1.xpose.msra.mxu0 0.0
    %404 = vmatprep.subr.mxu0 0.0
    %405 = vmatpush1.xpose.msra.mxu0 0.0
    %406 = vmatprep.subr.mxu0 0.0
    %407 = vmatpush1.xpose.msra.mxu0 0.0
    %408 = vmatprep.subr.mxu0 0.0
    %409 = vmatpush1.xpose.msra.mxu0 0.0
    %410 = vmatprep.subr.mxu0 0.0
    %411 = vmatpush1.xpose.msra.mxu0 0.0
    %412 = vmatprep.subr.mxu0 0.0
    %413 = vmatpush1.xpose.msra.mxu0 0.0
    %414 = vmatprep.subr.mxu0 0.0
    %415 = vmatpush1.xpose.msra.mxu0 0.0
    %416 = vmatprep.subr.mxu0 0.0
    %417 = vmatpush1.xpose.msra.mxu0 0.0
    %418 = vmatprep.subr.mxu0 0.0
    %419 = vmatpush1.xpose.msra.mxu0 0.0
    %420 = vmatprep.subr.mxu0 0.0
    %421 = vmatpush1.xpose.msra.mxu0 0.0
    %422 = vmatprep.subr.mxu0 0.0
    %423 = vmatpush1.xpose.msra.mxu0 0.0
    %424 = vmatprep.subr.mxu0 0.0
    %425 = vmatpush1.xpose.msra.mxu0 0.0
    %426 = vmatprep.subr.mxu0 0.0
    %427 = vmatpush1.xpose.msra.mxu0 0.0
    %428 = vmatprep.subr.mxu0 0.0
    %429 = vmatpush1.xpose.msra.mxu0 0.0
    %430 = vmatprep.subr.mxu0 0.0
    %431 = vmatpush1.xpose.msra.mxu0 0.0
    %432 = vmatprep.mubr.f32.mxu0 0.0
    %433 = vmatmul.mubr.f32.gmra.mrb[0].mxu0 %v336
    %v434 = vpop.f32.mrb[0].mxu0
    %v435 = vadd.f32 %v205, %v434
    %v436 = vpop.f32.mrb[0].mxu0
    %437 = vmatprep.mubr.f32.mxu0 0.0
    %438 = vmatmul.mubr.f32.gmra.mrb[0].mxu0 %v338
    %v439 = vpop.f32.mrb[0].mxu0
    %v440 = vadd.f32 %v206, %v439
    %v441 = vpop.f32.mrb[0].mxu0
    %442 = vmatprep.mubr.f32.mxu0 0.0
    %443 = vmatmul.mubr.f32.gmra.mrb[0].mxu0 %v340
    %v444 = vpop.f32.mrb[0].mxu0
    %v445 = vadd.f32 %v207, %v444
    %v446 = vpop.f32.mrb[0].mxu0
    %447 = vmatprep.mubr.f32.mxu0 0.0
    %448 = vmatmul.mubr.f32.gmra.mrb[0].mxu0 %v342
    %v449 = vpop.f32.mrb[0].mxu0
    %v450 = vadd.f32 %v208, %v449
    %v451 = vpop.f32.mrb[0].mxu0
    %452 = vmatprep.mubr.f32.mxu0 0.0
    %453 = vmatmul.mubr.f32.gmra.mrb[0].mxu0 %v344
    %v454 = vpop.f32.mrb[0].mxu0
    %v455 = vadd.f32 %v209, %v454
    %v456 = vpop.f32.mrb[0].mxu0
    %457 = vmatprep.mubr.f32.mxu0 0.0
    %458 = vmatmul.mubr.f32.gmra.mrb[0].mxu0 %v346
    %v459 = vpop.f32.mrb[0].mxu0
    %v460 = vadd.f32 %v210, %v459
    %v461 = vpop.f32.mrb[0].mxu0
    %462 = vmatprep.mubr.f32.mxu0 0.0
    %463 = vmatmul.mubr.f32.gmra.mrb[0].mxu0 %v348
    %v464 = vpop.f32.mrb[0].mxu0
    %v465 = vadd.f32 %v211, %v464
    %v466 = vpop.f32.mrb[0].mxu0
    %467 = vmatprep.mubr.f32.mxu0 0.0
    %468 = vmatmul.mubr.f32.gmra.mrb[0].mxu0 %v350
    %v469 = vpop.f32.mrb[0].mxu0
    %v470 = vadd.f32 %v212, %v469
    %v471 = vpop.f32.mrb[0].mxu0
    %472 = vdwg.mxu0
    %vm473 = vcmask 523264
    %v474 = vsel %vm473, %v435, -inf
    %475 = vmax.xlane.f32.xlu0 %v474
    %v476 = vpop.xlane.xlu0 %475
    %v477 = vsel %vm473, %v440, -inf
    %478 = vmax.xlane.f32.xlu0 %v477
    %v479 = vpop.xlane.xlu0 %478
    %v480 = vsel %vm473, %v445, -inf
    %481 = vmax.xlane.f32.xlu0 %v480
    %v482 = vpop.xlane.xlu0 %481
    %v483 = vsel %vm473, %v450, -inf
    %484 = vmax.xlane.f32.xlu0 %v483
    %v485 = vpop.xlane.xlu0 %484
    %v486 = vsel %vm473, %v455, -inf
    %487 = vmax.xlane.f32.xlu0 %v486
    %v488 = vpop.xlane.xlu0 %487
    %v489 = vsel %vm473, %v460, -inf
    %490 = vmax.xlane.f32.xlu0 %v489
    %v491 = vpop.xlane.xlu0 %490
    %v492 = vsel %vm473, %v465, -inf
    %493 = vmax.xlane.f32.xlu0 %v492
    %v494 = vpop.xlane.xlu0 %493
    %v495 = vsel %vm473, %v470, -inf
    %496 = vmax.xlane.f32.xlu0 %v495
    %v497 = vpop.xlane.xlu0 %496
    %v498 = vsub.f32 %v435, %v476
    %v499 = vsub.f32 %v440, %v479
    %v500 = vsub.f32 %v445, %v482
    %v501 = vsub.f32 %v450, %v485
    %v502 = vsub.f32 %v455, %v488
    %v503 = vsub.f32 %v460, %v491
    %v504 = vsub.f32 %v465, %v494
    %v505 = vsub.f32 %v470, %v497
    %v506 = vmul.f32 %v498, 1.442695
    %v507 = vpow.pop %v506
    %v508 = vmul.f32 %v499, 1.442695
    %v509 = vpow.pop %v508
    %v510 = vmul.f32 %v500, 1.442695
    %v511 = vpow.pop %v510
    %v512 = vmul.f32 %v501, 1.442695
    %v513 = vpow.pop %v512
    %v514 = vmul.f32 %v502, 1.442695
    %v515 = vpow.pop %v514
    %v516 = vmul.f32 %v503, 1.442695
    %v517 = vpow.pop %v516
    %v518 = vmul.f32 %v504, 1.442695
    %v519 = vpow.pop %v518
    %v520 = vmul.f32 %v505, 1.442695
    %v521 = vpow.pop %v520
    %v522 = vsel %vm473, %v507, 0.0
    %523 = vadd.xlane.f32.xlu0 %v522
    %v524 = vpop.xlane.xlu0 %523
    %v525 = vsel %vm473, %v509, 0.0
    %526 = vadd.xlane.f32.xlu0 %v525
    %v527 = vpop.xlane.xlu0 %526
    %v528 = vsel %vm473, %v511, 0.0
    %529 = vadd.xlane.f32.xlu0 %v528
    %v530 = vpop.xlane.xlu0 %529
    %v531 = vsel %vm473, %v513, 0.0
    %532 = vadd.xlane.f32.xlu0 %v531
    %v533 = vpop.xlane.xlu0 %532
    %v534 = vsel %vm473, %v515, 0.0
    %535 = vadd.xlane.f32.xlu0 %v534
    %v536 = vpop.xlane.xlu0 %535
    %v537 = vsel %vm473, %v517, 0.0
    %538 = vadd.xlane.f32.xlu0 %v537
    %v539 = vpop.xlane.xlu0 %538
    %v540 = vsel %vm473, %v519, 0.0
    %541 = vadd.xlane.f32.xlu0 %v540
    %v542 = vpop.xlane.xlu0 %541
    %v543 = vsel %vm473, %v521, 0.0
    %544 = vadd.xlane.f32.xlu0 %v543
    %v545 = vpop.xlane.xlu0 %544
    %v546 = vrcp.pop %v524
    %v547 = vrcp.pop %v527
    %v548 = vrcp.pop %v530
    %v549 = vrcp.pop %v533
    %v550 = vrcp.pop %v536
    %v551 = vrcp.pop %v539
    %v552 = vrcp.pop %v542
    %v553 = vrcp.pop %v545
    %v554 = vmul.f32 %v507, %v546
    %v555 = vmul.f32 %v509, %v547
    %v556 = vmul.f32 %v511, %v548
    %v557 = vmul.f32 %v513, %v549
    %v558 = vmul.f32 %v515, %v550
    %v559 = vmul.f32 %v517, %v551
    %v560 = vmul.f32 %v519, %v552
    %v561 = vmul.f32 %v521, %v553
    %562 = vrot.lane.b32.xlu0 %v297, 64
    %v563 = vpop.permute.xlu0 %562
    %564 = vrot.lane.b32.xlu0 %v302, 64
    %v565 = vpop.permute.xlu0 %564
    %566 = vrot.lane.b32.xlu0 %v308, 64
    %v567 = vpop.permute.xlu0 %566
    %568 = vrot.lane.b32.xlu0 %v310, 64
    %v569 = vpop.permute.xlu0 %568
    %570 = vrot.lane.b32.xlu0 %v312, 64
    %v571 = vpop.permute.xlu0 %570
    %572 = vrot.lane.b32.xlu0 %v314, 64
    %v573 = vpop.permute.xlu0 %572
    %574 = vrot.lane.b32.xlu0 %v316, 64
    %v575 = vpop.permute.xlu0 %574
    %576 = vrot.lane.b32.xlu0 %v318, 64
    %v577 = vpop.permute.xlu0 %576
    %v587 = vsel %vm473, %v554, 0
    %v590 = vsel %vm473, %v555, 0
    %v593 = vsel %vm473, %v556, 0
    %v596 = vsel %vm473, %v557, 0
    %v599 = vsel %vm473, %v558, 0
    %v602 = vsel %vm473, %v559, 0
    %v605 = vsel %vm473, %v560, 0
    %v608 = vsel %vm473, %v561, 0
    %610 = vmatprep.subr.mxu0 0.0
    %611 = vmatpush1.msra.mxu0 %v563
    %612 = vmatprep.subr.mxu0 0.0
    %613 = vmatpush1.msra.mxu0 %v565
    %614 = vmatprep.subr.mxu0 0.0
    %615 = vmatpush1.msra.mxu0 %v567
    %616 = vmatprep.subr.mxu0 0.0
    %617 = vmatpush1.msra.mxu0 %v569
    %618 = vmatprep.subr.mxu0 0.0
    %619 = vmatpush1.msra.mxu0 %v571
    %620 = vmatprep.subr.mxu0 0.0
    %621 = vmatpush1.msra.mxu0 %v573
    %622 = vmatprep.subr.mxu0 0.0
    %623 = vmatpush1.msra.mxu0 %v575
    %624 = vmatprep.subr.mxu0 0.0
    %625 = vmatpush1.msra.mxu0 %v577
    %626 = vmatprep.subr.mxu0 0.0
    %627 = vmatpush1.msra.mxu0 0.0
    %628 = vmatprep.subr.mxu0 0.0
    %629 = vmatpush1.msra.mxu0 0.0
    %630 = vmatprep.subr.mxu0 0.0
    %631 = vmatpush1.msra.mxu0 0.0
    %632 = vmatprep.subr.mxu0 0.0
    %633 = vmatpush1.msra.mxu0 0.0
    %634 = vmatprep.subr.mxu0 0.0
    %635 = vmatpush1.msra.mxu0 0.0
    %636 = vmatprep.subr.mxu0 0.0
    %637 = vmatpush1.msra.mxu0 0.0
    %638 = vmatprep.subr.mxu0 0.0
    %639 = vmatpush1.msra.mxu0 0.0
    %640 = vmatprep.subr.mxu0 0.0
    %641 = vmatpush1.msra.mxu0 0.0
    %642 = vmatprep.subr.mxu0 0.0
    %643 = vmatpush1.msra.mxu0 0.0
    %644 = vmatprep.subr.mxu0 0.0
    %645 = vmatpush1.msra.mxu0 0.0
    %646 = vmatprep.subr.mxu0 0.0
    %647 = vmatpush1.msra.mxu0 0.0
    %648 = vmatprep.subr.mxu0 0.0
    %649 = vmatpush1.msra.mxu0 0.0
    %650 = vmatprep.subr.mxu0 0.0
    %651 = vmatpush1.msra.mxu0 0.0
    %652 = vmatprep.subr.mxu0 0.0
    %653 = vmatpush1.msra.mxu0 0.0
    %654 = vmatprep.subr.mxu0 0.0
    %655 = vmatpush1.msra.mxu0 0.0
    %656 = vmatprep.subr.mxu0 0.0
    %657 = vmatpush1.msra.mxu0 0.0
    %658 = vmatprep.subr.mxu0 0.0
    %659 = vmatpush1.msra.mxu0 0.0
    %660 = vmatprep.subr.mxu0 0.0
    %661 = vmatpush1.msra.mxu0 0.0
    %662 = vmatprep.subr.mxu0 0.0
    %663 = vmatpush1.msra.mxu0 0.0
    %664 = vmatprep.subr.mxu0 0.0
    %665 = vmatpush1.msra.mxu0 0.0
    %666 = vmatprep.subr.mxu0 0.0
    %667 = vmatpush1.msra.mxu0 0.0
    %668 = vmatprep.subr.mxu0 0.0
    %669 = vmatpush1.msra.mxu0 0.0
    %670 = vmatprep.subr.mxu0 0.0
    %671 = vmatpush1.msra.mxu0 0.0
    %672 = vmatprep.subr.mxu0 0.0
    %673 = vmatpush1.msra.mxu0 0.0
    %674 = vmatprep.mubr.f32.mxu0 0.0
    %675 = vmatmul.mubr.f32.gmra.mrb[0].mxu0 %v587
    %v676 = vpop.f32.mrb[0].mxu0
    %v677 = vadd.f32 0.0, %v676
    %v678 = vpop.f32.mrb[0].mxu0
    %679 = vmatprep.mubr.f32.mxu0 0.0
    %680 = vmatmul.mubr.f32.gmra.mrb[0].mxu0 %v590
    %v681 = vpop.f32.mrb[0].mxu0
    %v682 = vadd.f32 0.0, %v681
    %v683 = vpop.f32.mrb[0].mxu0
    %684 = vmatprep.mubr.f32.mxu0 0.0
    %685 = vmatmul.mubr.f32.gmra.mrb[0].mxu0 %v593
    %v686 = vpop.f32.mrb[0].mxu0
    %v687 = vadd.f32 0.0, %v686
    %v688 = vpop.f32.mrb[0].mxu0
    %689 = vmatprep.mubr.f32.mxu0 0.0
    %690 = vmatmul.mubr.f32.gmra.mrb[0].mxu0 %v596
    %v691 = vpop.f32.mrb[0].mxu0
    %v692 = vadd.f32 0.0, %v691
    %v693 = vpop.f32.mrb[0].mxu0
    %694 = vmatprep.mubr.f32.mxu0 0.0
    %695 = vmatmul.mubr.f32.gmra.mrb[0].mxu0 %v599
    %v696 = vpop.f32.mrb[0].mxu0
    %v697 = vadd.f32 0.0, %v696
    %v698 = vpop.f32.mrb[0].mxu0
    %699 = vmatprep.mubr.f32.mxu0 0.0
    %700 = vmatmul.mubr.f32.gmra.mrb[0].mxu0 %v602
    %v701 = vpop.f32.mrb[0].mxu0
    %v702 = vadd.f32 0.0, %v701
    %v703 = vpop.f32.mrb[0].mxu0
    %704 = vmatprep.mubr.f32.mxu0 0.0
    %705 = vmatmul.mubr.f32.gmra.mrb[0].mxu0 %v605
    %v706 = vpop.f32.mrb[0].mxu0
    %v707 = vadd.f32 0.0, %v706
    %v708 = vpop.f32.mrb[0].mxu0
    %709 = vmatprep.mubr.f32.mxu0 0.0
    %710 = vmatmul.mubr.f32.gmra.mrb[0].mxu0 %v608
    %v711 = vpop.f32.mrb[0].mxu0
    %v712 = vadd.f32 0.0, %v711
    %v713 = vpop.f32.mrb[0].mxu0
    %714 = vdwg.mxu0
    %717 = vrot.lane.b32.xlu0 %v687, 8
    %v718 = vpop.permute.xlu0 %717
    %719 = vrot.lane.b32.xlu0 %v692, 8
    %v720 = vpop.permute.xlu0 %719
    %725 = vrot.lane.b32.xlu0 %v697, 16
    %v726 = vpop.permute.xlu0 %725
    %727 = vrot.lane.b32.xlu0 %v702, 16
    %v728 = vpop.permute.xlu0 %727
    %733 = vrot.lane.b32.xlu0 %v707, 24
    %v734 = vpop.permute.xlu0 %733
    %735 = vrot.lane.b32.xlu0 %v712, 24
    %v736 = vpop.permute.xlu0 %735
    %v739 = vsel %vm335, %v677, %v718
    %v740 = vsel %vm335, %v682, %v720
    %vm741 = vcmask 130048
    %v742 = vsel %vm741, %v739, %v726
    %v743 = vsel %vm741, %v740, %v728
    %vm744 = vcmask 195584
    %v745 = vsel %vm744, %v742, %v734
    %v746 = vsel %vm744, %v743, %v736
    %v747 = vld [vmem:[%s6] sm:$0xff]
    %v748 = vld [vmem:[%s6 + $0x8] sm:$0xff]
    %v749 = vld [vmem:[%s6 + $0x10] sm:$0xff]
    %v750 = vld [vmem:[%s6 + $0x18] sm:$0xff]
    %v751 = vld [vmem:[#allocation8] sm:$0x1]
    %v753 = vlaneseq
    %v754 = vshrl.u32 %v753, 7
    %v755 = vsub.s32 0, %v754
    %v756 = vrot.slane %v751, %v755
    %v759 = vsel %vm155, %v745, 0
    %v762 = vsel %vm155, %v746, 0
    %764 = vmatprep.subr.mxu0 0.0
    %765 = vmatpush1.msra.mxu0 %v747
    %766 = vmatprep.subr.mxu0 0.0
    %767 = vmatpush1.msra.mxu0 %v748
    %768 = vmatprep.subr.mxu0 0.0
    %769 = vmatpush1.msra.mxu0 %v749
    %770 = vmatprep.subr.mxu0 0.0
    %771 = vmatpush1.msra.mxu0 %v750
    %772 = vmatprep.subr.mxu0 0.0
    %773 = vmatpush1.msra.mxu0 0.0
    %774 = vmatprep.subr.mxu0 0.0
    %775 = vmatpush1.msra.mxu0 0.0
    %776 = vmatprep.subr.mxu0 0.0
    %777 = vmatpush1.msra.mxu0 0.0
    %778 = vmatprep.subr.mxu0 0.0
    %779 = vmatpush1.msra.mxu0 0.0
    %780 = vmatprep.subr.mxu0 0.0
    %781 = vmatpush1.msra.mxu0 0.0
    %782 = vmatprep.subr.mxu0 0.0
    %783 = vmatpush1.msra.mxu0 0.0
    %784 = vmatprep.subr.mxu0 0.0
    %785 = vmatpush1.msra.mxu0 0.0
    %786 = vmatprep.subr.mxu0 0.0
    %787 = vmatpush1.msra.mxu0 0.0
    %788 = vmatprep.subr.mxu0 0.0
    %789 = vmatpush1.msra.mxu0 0.0
    %790 = vmatprep.subr.mxu0 0.0
    %791 = vmatpush1.msra.mxu0 0.0
    %792 = vmatprep.subr.mxu0 0.0
    %793 = vmatpush1.msra.mxu0 0.0
    %794 = vmatprep.subr.mxu0 0.0
    %795 = vmatpush1.msra.mxu0 0.0
    %796 = vmatprep.subr.mxu0 0.0
    %797 = vmatpush1.msra.mxu0 0.0
    %798 = vmatprep.subr.mxu0 0.0
    %799 = vmatpush1.msra.mxu0 0.0
    %800 = vmatprep.subr.mxu0 0.0
    %801 = vmatpush1.msra.mxu0 0.0
    %802 = vmatprep.subr.mxu0 0.0
    %803 = vmatpush1.msra.mxu0 0.0
    %804 = vmatprep.subr.mxu0 0.0
    %805 = vmatpush1.msra.mxu0 0.0
    %806 = vmatprep.subr.mxu0 0.0
    %807 = vmatpush1.msra.mxu0 0.0
    %808 = vmatprep.subr.mxu0 0.0
    %809 = vmatpush1.msra.mxu0 0.0
    %810 = vmatprep.subr.mxu0 0.0
    %811 = vmatpush1.msra.mxu0 0.0
    %812 = vmatprep.subr.mxu0 0.0
    %813 = vmatpush1.msra.mxu0 0.0
    %814 = vmatprep.subr.mxu0 0.0
    %815 = vmatpush1.msra.mxu0 0.0
    %816 = vmatprep.subr.mxu0 0.0
    %817 = vmatpush1.msra.mxu0 0.0
    %818 = vmatprep.subr.mxu0 0.0
    %819 = vmatpush1.msra.mxu0 0.0
    %820 = vmatprep.subr.mxu0 0.0
    %821 = vmatpush1.msra.mxu0 0.0
    %822 = vmatprep.subr.mxu0 0.0
    %823 = vmatpush1.msra.mxu0 0.0
    %824 = vmatprep.subr.mxu0 0.0
    %825 = vmatpush1.msra.mxu0 0.0
    %826 = vmatprep.subr.mxu0 0.0
    %827 = vmatpush1.msra.mxu0 0.0
    %828 = vmatprep.mubr.f32.mxu0 0.0
    %829 = vmatmul.mubr.f32.gmra.mrb[0].mxu0 %v759
    %v830 = vpop.f32.mrb[0].mxu0
    %v831 = vadd.f32 %v756, %v830
    %v832 = vpop.f32.mrb[0].mxu0
    %833 = vmatprep.mubr.f32.mxu0 0.0
    %834 = vmatmul.mubr.f32.gmra.mrb[0].mxu0 %v762
    %v835 = vpop.f32.mrb[0].mxu0
    %v836 = vadd.f32 %v756, %v835
    %v837 = vpop.f32.mrb[0].mxu0
    %838 = vdwg.mxu0
    %v839 = vadd.f32 %v831, %v203
    %v840 = vadd.f32 %v836, %v204
    %v841 = vld [vmem:[#allocation10] sm:$0x1]
    %v842 = vld [vmem:[#allocation11] sm:$0x1]
    %v843 = vsel %vm155, %v839, 0.0
    %844 = vadd.xlane.f32.xlu0 %v843
    %v845 = vpop.xlane.xlu0 %844
    %v846 = vsel %vm155, %v840, 0.0
    %847 = vadd.xlane.f32.xlu0 %v846
    %v848 = vpop.xlane.xlu0 %847
    %v849 = vmul.f32 %v845, %v162
    %v850 = vmul.f32 %v848, %v162
    %v851 = vmul.f32 %v839, %v839
    %v852 = vmul.f32 %v840, %v840
    %v853 = vsel %vm155, %v851, 0.0
    %854 = vadd.xlane.f32.xlu0 %v853
    %v855 = vpop.xlane.xlu0 %854
    %v856 = vsel %vm155, %v852, 0.0
    %857 = vadd.xlane.f32.xlu0 %v856
    %v858 = vpop.xlane.xlu0 %857
    %v859 = vmul.f32 %v855, %v162
    %v860 = vmul.f32 %v858, %v162
    %v861 = vmul.f32 %v849, %v849
    %v862 = vmul.f32 %v850, %v850
    %v863 = vsub.f32 %v859, %v861
    %v864 = vsub.f32 %v860, %v862
    %v865 = vmax.f32 %v863, 0.0
    %v866 = vmax.f32 %v864, 0.0
    %v867 = vsub.f32 %v839, %v849
    %v868 = vsub.f32 %v840, %v850
    %v869 = vadd.f32 %v865, 1e-12
    %v870 = vadd.f32 %v866, 1e-12
    %v871 = vrsqrt.pop %v869
    %v872 = vrsqrt.pop %v870
    %v873 = vmul.f32 %v867, %v871
    %v874 = vmul.f32 %v868, %v872
    %v876 = vlaneseq
    %v877 = vshrl.u32 %v876, 7
    %v878 = vsub.s32 0, %v877
    %v879 = vrot.slane %v841, %v878
    %v881 = vmul.f32 %v873, %v879
    %v882 = vmul.f32 %v874, %v879
    %v884 = vlaneseq
    %v885 = vshrl.u32 %v884, 7
    %v886 = vsub.s32 0, %v885
    %v887 = vrot.slane %v842, %v886
    %v889 = vadd.f32 %v881, %v887
    %v890 = vadd.f32 %v882, %v887
    %v891 = vld [vmem:[#allocation13] sm:$0xff]
    %v892 = vld [vmem:[#allocation13 + $0x8] sm:$0xff]
    %v893 = vld [vmem:[#allocation13 + $0x10] sm:$0xff]
    %v894 = vld [vmem:[#allocation13 + $0x18] sm:$0xff]
    %v895 = vld [vmem:[%s11] sm:$0x1]
    %v897 = vlaneseq
    %v898 = vshrl.u32 %v897, 7
    %v899 = vsub.s32 0, %v898
    %v900 = vrot.slane %v895, %v899
    %v903 = vsel %vm155, %v889, 0
    %v906 = vsel %vm155, %v890, 0
    %908 = vmatprep.subr.mxu0 0.0
    %909 = vmatpush1.msra.mxu0 %v891
    %910 = vmatprep.subr.mxu0 0.0
    %911 = vmatpush1.msra.mxu0 %v892
    %912 = vmatprep.subr.mxu0 0.0
    %913 = vmatpush1.msra.mxu0 %v893
    %914 = vmatprep.subr.mxu0 0.0
    %915 = vmatpush1.msra.mxu0 %v894
    %916 = vmatprep.subr.mxu0 0.0
    %917 = vmatpush1.msra.mxu0 0.0
    %918 = vmatprep.subr.mxu0 0.0
    %919 = vmatpush1.msra.mxu0 0.0
    %920 = vmatprep.subr.mxu0 0.0
    %921 = vmatpush1.msra.mxu0 0.0
    %922 = vmatprep.subr.mxu0 0.0
    %923 = vmatpush1.msra.mxu0 0.0
    %924 = vmatprep.subr.mxu0 0.0
    %925 = vmatpush1.msra.mxu0 0.0
    %926 = vmatprep.subr.mxu0 0.0
    %927 = vmatpush1.msra.mxu0 0.0
    %928 = vmatprep.subr.mxu0 0.0
    %929 = vmatpush1.msra.mxu0 0.0
    %930 = vmatprep.subr.mxu0 0.0
    %931 = vmatpush1.msra.mxu0 0.0
    %932 = vmatprep.subr.mxu0 0.0
    %933 = vmatpush1.msra.mxu0 0.0
    %934 = vmatprep.subr.mxu0 0.0
    %935 = vmatpush1.msra.mxu0 0.0
    %936 = vmatprep.subr.mxu0 0.0
    %937 = vmatpush1.msra.mxu0 0.0
    %938 = vmatprep.subr.mxu0 0.0
    %939 = vmatpush1.msra.mxu0 0.0
    %940 = vmatprep.subr.mxu0 0.0
    %941 = vmatpush1.msra.mxu0 0.0
    %942 = vmatprep.subr.mxu0 0.0
    %943 = vmatpush1.msra.mxu0 0.0
    %944 = vmatprep.subr.mxu0 0.0
    %945 = vmatpush1.msra.mxu0 0.0
    %946 = vmatprep.subr.mxu0 0.0
    %947 = vmatpush1.msra.mxu0 0.0
    %948 = vmatprep.subr.mxu0 0.0
    %949 = vmatpush1.msra.mxu0 0.0
    %950 = vmatprep.subr.mxu0 0.0
    %951 = vmatpush1.msra.mxu0 0.0
    %952 = vmatprep.subr.mxu0 0.0
    %953 = vmatpush1.msra.mxu0 0.0
    %954 = vmatprep.subr.mxu0 0.0
    %955 = vmatpush1.msra.mxu0 0.0
    %956 = vmatprep.subr.mxu0 0.0
    %957 = vmatpush1.msra.mxu0 0.0
    %958 = vmatprep.subr.mxu0 0.0
    %959 = vmatpush1.msra.mxu0 0.0
    %960 = vmatprep.subr.mxu0 0.0
    %961 = vmatpush1.msra.mxu0 0.0
    %962 = vmatprep.subr.mxu0 0.0
    %963 = vmatpush1.msra.mxu0 0.0
    %964 = vmatprep.subr.mxu0 0.0
    %965 = vmatpush1.msra.mxu0 0.0
    %966 = vmatprep.subr.mxu0 0.0
    %967 = vmatpush1.msra.mxu0 0.0
    %968 = vmatprep.subr.mxu0 0.0
    %969 = vmatpush1.msra.mxu0 0.0
    %970 = vmatprep.subr.mxu0 0.0
    %971 = vmatpush1.msra.mxu0 0.0
    %972 = vmatprep.mubr.f32.mxu0 0.0
    %973 = vmatmul.mubr.f32.gmra.mrb[0].mxu0 %v903
    %v974 = vpop.f32.mrb[0].mxu0
    %v975 = vadd.f32 %v900, %v974
    %v976 = vpop.f32.mrb[0].mxu0
    %977 = vmatprep.mubr.f32.mxu0 0.0
    %978 = vmatmul.mubr.f32.gmra.mrb[0].mxu0 %v906
    %v979 = vpop.f32.mrb[0].mxu0
    %v980 = vadd.f32 %v900, %v979
    %v981 = vpop.f32.mrb[0].mxu0
    %982 = vdwg.mxu0
    %v983 = vmul.f32 %v975, 0.5
    %v984 = vmul.f32 %v980, 0.5
    %v985 = vmul.f32 %v975, 0.044715
    %v986 = vmul.f32 %v980, 0.044715
    %v987 = vmul.f32 %v985, %v975
    %v988 = vmul.f32 %v986, %v980
    %v989 = vmul.f32 %v987, %v975
    %v990 = vmul.f32 %v988, %v980
    %v991 = vadd.f32 %v975, %v989
    %v992 = vadd.f32 %v980, %v990
    %v993 = vmul.f32 %v991, 0.7978846
    %v994 = vmul.f32 %v992, 0.7978846
    %v995 = vtanh.pop %v993
    %v996 = vtanh.pop %v994
    %v997 = vadd.f32 %v995, 1.0
    %v998 = vadd.f32 %v996, 1.0
    %v999 = vmul.f32 %v983, %v997
    %v1000 = vmul.f32 %v984, %v998
    %v1001 = vld [vmem:[%s12] sm:$0xff]
    %v1002 = vld [vmem:[%s12 + $0x8] sm:$0xff]
    %v1003 = vld [vmem:[%s12 + $0x10] sm:$0xff]
    %v1004 = vld [vmem:[%s12 + $0x18] sm:$0xff]
    %v1005 = vld [vmem:[%s12 + $0x20] sm:$0xff]
    %v1006 = vld [vmem:[%s12 + $0x28] sm:$0xff]
    %v1007 = vld [vmem:[%s12 + $0x30] sm:$0xff]
    %v1008 = vld [vmem:[%s12 + $0x38] sm:$0xff]
    %v1009 = vld [vmem:[%s13] sm:$0x1]
    %v1011 = vlaneseq
    %v1012 = vshrl.u32 %v1011, 7
    %v1013 = vsub.s32 0, %v1012
    %v1014 = vrot.slane %v1009, %v1013
    %v1017 = vsel %vm473, %v999, 0
    %v1020 = vsel %vm473, %v1000, 0
    %1022 = vmatprep.subr.mxu0 0.0
    %1023 = vmatpush1.msra.mxu0 %v1001
    %1024 = vmatprep.subr.mxu0 0.0
    %1025 = vmatpush1.msra.mxu0 %v1002
    %1026 = vmatprep.subr.mxu0 0.0
    %1027 = vmatpush1.msra.mxu0 %v1003
    %1028 = vmatprep.subr.mxu0 0.0
    %1029 = vmatpush1.msra.mxu0 %v1004
    %1030 = vmatprep.subr.mxu0 0.0
    %1031 = vmatpush1.msra.mxu0 %v1005
    %1032 = vmatprep.subr.mxu0 0.0
    %1033 = vmatpush1.msra.mxu0 %v1006
    %1034 = vmatprep.subr.mxu0 0.0
    %1035 = vmatpush1.msra.mxu0 %v1007
    %1036 = vmatprep.subr.mxu0 0.0
    %1037 = vmatpush1.msra.mxu0 %v1008
    %1038 = vmatprep.subr.mxu0 0.0
    %1039 = vmatpush1.msra.mxu0 0.0
    %1040 = vmatprep.subr.mxu0 0.0
    %1041 = vmatpush1.msra.mxu0 0.0
    %1042 = vmatprep.subr.mxu0 0.0
    %1043 = vmatpush1.msra.mxu0 0.0
    %1044 = vmatprep.subr.mxu0 0.0
    %1045 = vmatpush1.msra.mxu0 0.0
    %1046 = vmatprep.subr.mxu0 0.0
    %1047 = vmatpush1.msra.mxu0 0.0
    %1048 = vmatprep.subr.mxu0 0.0
    %1049 = vmatpush1.msra.mxu0 0.0
    %1050 = vmatprep.subr.mxu0 0.0
    %1051 = vmatpush1.msra.mxu0 0.0
    %1052 = vmatprep.subr.mxu0 0.0
    %1053 = vmatpush1.msra.mxu0 0.0
    %1054 = vmatprep.subr.mxu0 0.0
    %1055 = vmatpush1.msra.mxu0 0.0
    %1056 = vmatprep.subr.mxu0 0.0
    %1057 = vmatpush1.msra.mxu0 0.0
    %1058 = vmatprep.subr.mxu0 0.0
    %1059 = vmatpush1.msra.mxu0 0.0
    %1060 = vmatprep.subr.mxu0 0.0
    %1061 = vmatpush1.msra.mxu0 0.0
    %1062 = vmatprep.subr.mxu0 0.0
    %1063 = vmatpush1.msra.mxu0 0.0
    %1064 = vmatprep.subr.mxu0 0.0
    %1065 = vmatpush1.msra.mxu0 0.0
    %1066 = vmatprep.subr.mxu0 0.0
    %1067 = vmatpush1.msra.mxu0 0.0
    %1068 = vmatprep.subr.mxu0 0.0
    %1069 = vmatpush1.msra.mxu0 0.0
    %1070 = vmatprep.subr.mxu0 0.0
    %1071 = vmatpush1.msra.mxu0 0.0
    %1072 = vmatprep.subr.mxu0 0.0
    %1073 = vmatpush1.msra.mxu0 0.0
    %1074 = vmatprep.subr.mxu0 0.0
    %1075 = vmatpush1.msra.mxu0 0.0
    %1076 = vmatprep.subr.mxu0 0.0
    %1077 = vmatpush1.msra.mxu0 0.0
    %1078 = vmatprep.subr.mxu0 0.0
    %1079 = vmatpush1.msra.mxu0 0.0
    %1080 = vmatprep.subr.mxu0 0.0
    %1081 = vmatpush1.msra.mxu0 0.0
    %1082 = vmatprep.subr.mxu0 0.0
    %1083 = vmatpush1.msra.mxu0 0.0
    %1084 = vmatprep.subr.mxu0 0.0
    %1085 = vmatpush1.msra.mxu0 0.0
    %1086 = vmatprep.mubr.f32.mxu0 0.0
    %1087 = vmatmul.mubr.f32.gmra.mrb[0].mxu0 %v1017
    %v1088 = vpop.f32.mrb[0].mxu0
    %v1089 = vadd.f32 %v1014, %v1088
    %v1090 = vpop.f32.mrb[0].mxu0
    %1091 = vmatprep.mubr.f32.mxu0 0.0
    %1092 = vmatmul.mubr.f32.gmra.mrb[0].mxu0 %v1020
    %v1093 = vpop.f32.mrb[0].mxu0
    %v1094 = vadd.f32 %v1014, %v1093
    %v1095 = vpop.f32.mrb[0].mxu0
    %1096 = vdwg.mxu0
    %v1097 = vadd.f32 %v1089, %v889
    %v1098 = vadd.f32 %v1094, %v890
    %v1099 = vld [vmem:[%s14] sm:$0x1]
    %v1100 = vld [vmem:[%s15] sm:$0x1]
    %v1101 = vsel %vm155, %v1097, 0.0
    %1102 = vadd.xlane.f32.xlu0 %v1101
    %v1103 = vpop.xlane.xlu0 %1102
    %v1104 = vsel %vm155, %v1098, 0.0
    %1105 = vadd.xlane.f32.xlu0 %v1104
    %v1106 = vpop.xlane.xlu0 %1105
    %v1107 = vmul.f32 %v1103, %v162
    %v1108 = vmul.f32 %v1106, %v162
    %v1109 = vmul.f32 %v1097, %v1097
    %v1110 = vmul.f32 %v1098, %v1098
    %v1111 = vsel %vm155, %v1109, 0.0
    %1112 = vadd.xlane.f32.xlu0 %v1111
    %v1113 = vpop.xlane.xlu0 %1112
    %v1114 = vsel %vm155, %v1110, 0.0
    %1115 = vadd.xlane.f32.xlu0 %v1114
    %v1116 = vpop.xlane.xlu0 %1115
    %v1117 = vmul.f32 %v1113, %v162
    %v1118 = vmul.f32 %v1116, %v162
    %v1119 = vmul.f32 %v1107, %v1107
    %v1120 = vmul.f32 %v1108, %v1108
    %v1121 = vsub.f32 %v1117, %v1119
    %v1122 = vsub.f32 %v1118, %v1120
    %v1123 = vmax.f32 %v1121, 0.0
    %v1124 = vmax.f32 %v1122, 0.0
    %v1125 = vsub.f32 %v1097, %v1107
    %v1126 = vsub.f32 %v1098, %v1108
    %v1127 = vadd.f32 %v1123, 1e-12
    %v1128 = vadd.f32 %v1124, 1e-12
    %v1129 = vrsqrt.pop %v1127
    %v1130 = vrsqrt.pop %v1128
    %v1131 = vmul.f32 %v1125, %v1129
    %v1132 = vmul.f32 %v1126, %v1130
    %v1134 = vlaneseq
    %v1135 = vshrl.u32 %v1134, 7
    %v1136 = vsub.s32 0, %v1135
    %v1137 = vrot.slane %v1099, %v1136
    %v1139 = vmul.f32 %v1131, %v1137
    %v1140 = vmul.f32 %v1132, %v1137
    %v1142 = vlaneseq
    %v1143 = vshrl.u32 %v1142, 7
    %v1144 = vsub.s32 0, %v1143
    %v1145 = vrot.slane %v1100, %v1144
    %v1147 = vadd.f32 %v1139, %v1145
    %v1148 = vadd.f32 %v1140, %v1145
    %s1149 = scalar_lea.vmem %s4, 32
    %v1150 = vld [vmem:[%s1149] sm:$0xff]
    %v1151 = vld [vmem:[%s1149 + $0x8] sm:$0xff]
    %v1152 = vld [vmem:[%s1149 + $0x10] sm:$0xff]
    %v1153 = vld [vmem:[%s1149 + $0x18] sm:$0xff]
    %s1154 = scalar_lea.vmem %s5, 1
    %v1155 = vld [vmem:[%s1154] sm:$0x1]
    %v1157 = vlaneseq
    %v1158 = vshrl.u32 %v1157, 7
    %v1159 = vsub.s32 0, %v1158
    %v1160 = vrot.slane %v1155, %v1159
    %v1163 = vsel %vm155, %v1147, 0
    %v1166 = vsel %vm155, %v1148, 0
    %1168 = vmatprep.subr.mxu0 0.0
    %1169 = vmatpush1.msra.mxu0 %v1150
    %1170 = vmatprep.subr.mxu0 0.0
    %1171 = vmatpush1.msra.mxu0 %v1151
    %1172 = vmatprep.subr.mxu0 0.0
    %1173 = vmatpush1.msra.mxu0 %v1152
    %1174 = vmatprep.subr.mxu0 0.0
    %1175 = vmatpush1.msra.mxu0 %v1153
    %1176 = vmatprep.subr.mxu0 0.0
    %1177 = vmatpush1.msra.mxu0 0.0
    %1178 = vmatprep.subr.mxu0 0.0
    %1179 = vmatpush1.msra.mxu0 0.0
    %1180 = vmatprep.subr.mxu0 0.0
    %1181 = vmatpush1.msra.mxu0 0.0
    %1182 = vmatprep.subr.mxu0 0.0
    %1183 = vmatpush1.msra.mxu0 0.0
    %1184 = vmatprep.subr.mxu0 0.0
    %1185 = vmatpush1.msra.mxu0 0.0
    %1186 = vmatprep.subr.mxu0 0.0
    %1187 = vmatpush1.msra.mxu0 0.0
    %1188 = vmatprep.subr.mxu0 0.0
    %1189 = vmatpush1.msra.mxu0 0.0
    %1190 = vmatprep.subr.mxu0 0.0
    %1191 = vmatpush1.msra.mxu0 0.0
    %1192 = vmatprep.subr.mxu0 0.0
    %1193 = vmatpush1.msra.mxu0 0.0
    %1194 = vmatprep.subr.mxu0 0.0
    %1195 = vmatpush1.msra.mxu0 0.0
    %1196 = vmatprep.subr.mxu0 0.0
    %1197 = vmatpush1.msra.mxu0 0.0
    %1198 = vmatprep.subr.mxu0 0.0
    %1199 = vmatpush1.msra.mxu0 0.0
    %1200 = vmatprep.subr.mxu0 0.0
    %1201 = vmatpush1.msra.mxu0 0.0
    %1202 = vmatprep.subr.mxu0 0.0
    %1203 = vmatpush1.msra.mxu0 0.0
    %1204 = vmatprep.subr.mxu0 0.0
    %1205 = vmatpush1.msra.mxu0 0.0
    %1206 = vmatprep.subr.mxu0 0.0
    %1207 = vmatpush1.msra.mxu0 0.0
    %1208 = vmatprep.subr.mxu0 0.0
    %1209 = vmatpush1.msra.mxu0 0.0
    %1210 = vmatprep.subr.mxu0 0.0
    %1211 = vmatpush1.msra.mxu0 0.0
    %1212 = vmatprep.subr.mxu0 0.0
    %1213 = vmatpush1.msra.mxu0 0.0
    %1214 = vmatprep.subr.mxu0 0.0
    %1215 = vmatpush1.msra.mxu0 0.0
    %1216 = vmatprep.subr.mxu0 0.0
    %1217 = vmatpush1.msra.mxu0 0.0
    %1218 = vmatprep.subr.mxu0 0.0
    %1219 = vmatpush1.msra.mxu0 0.0
    %1220 = vmatprep.subr.mxu0 0.0
    %1221 = vmatpush1.msra.mxu0 0.0
    %1222 = vmatprep.subr.mxu0 0.0
    %1223 = vmatpush1.msra.mxu0 0.0
    %1224 = vmatprep.subr.mxu0 0.0
    %1225 = vmatpush1.msra.mxu0 0.0
    %1226 = vmatprep.subr.mxu0 0.0
    %1227 = vmatpush1.msra.mxu0 0.0
    %1228 = vmatprep.subr.mxu0 0.0
    %1229 = vmatpush1.msra.mxu0 0.0
    %1230 = vmatprep.subr.mxu0 0.0
    %1231 = vmatpush1.msra.mxu0 0.0
    %1232 = vmatprep.mubr.f32.mxu0 0.0
    %1233 = vmatmul.mubr.f32.gmra.mrb[0].mxu0 %v1163
    %v1234 = vpop.f32.mrb[0].mxu0
    %v1235 = vadd.f32 %v1160, %v1234
    %v1236 = vpop.f32.mrb[0].mxu0
    %1237 = vmatprep.mubr.f32.mxu0 0.0
    %1238 = vmatmul.mubr.f32.gmra.mrb[0].mxu0 %v1166
    %v1239 = vpop.f32.mrb[0].mxu0
    %v1240 = vadd.f32 %v1160, %v1239
    %v1241 = vpop.f32.mrb[0].mxu0
    %1242 = vdwg.mxu0
    %1245 = vrot.lane.b32.xlu0 %v1235, 120
    %v1246 = vpop.permute.xlu0 %1245
    %1247 = vrot.lane.b32.xlu0 %v1240, 120
    %v1248 = vpop.permute.xlu0 %1247
    %1249 = vrot.lane.b32.xlu0 %v1235, 112
    %v1250 = vpop.permute.xlu0 %1249
    %1251 = vrot.lane.b32.xlu0 %v1240, 112
    %v1252 = vpop.permute.xlu0 %1251
    %1253 = vrot.lane.b32.xlu0 %v1235, 104
    %v1254 = vpop.permute.xlu0 %1253
    %1255 = vrot.lane.b32.xlu0 %v1240, 104
    %v1256 = vpop.permute.xlu0 %1255
    %1257 = vrot.lane.b32.xlu0 %v1235, 96
    %v1258 = vpop.permute.xlu0 %1257
    %1259 = vrot.lane.b32.xlu0 %v1240, 96
    %v1260 = vpop.permute.xlu0 %1259
    %1261 = vrot.lane.b32.xlu0 %v1246, 96
    %v1262 = vpop.permute.xlu0 %1261
    %1263 = vrot.lane.b32.xlu0 %v1248, 96
    %v1264 = vpop.permute.xlu0 %1263
    %1265 = vrot.lane.b32.xlu0 %v1250, 96
    %v1266 = vpop.permute.xlu0 %1265
    %1267 = vrot.lane.b32.xlu0 %v1252, 96
    %v1268 = vpop.permute.xlu0 %1267
    %1269 = vrot.lane.b32.xlu0 %v1254, 96
    %v1270 = vpop.permute.xlu0 %1269
    %1271 = vrot.lane.b32.xlu0 %v1256, 96
    %v1272 = vpop.permute.xlu0 %1271
    %v1273 = vsel %vm335, %v1235, 0
    %v1275 = vsel %vm335, %v1240, 0
    %v1277 = vsel %vm335, %v1246, 0
    %v1279 = vsel %vm335, %v1248, 0
    %v1281 = vsel %vm335, %v1250, 0
    %v1283 = vsel %vm335, %v1252, 0
    %v1285 = vsel %vm335, %v1254, 0
    %v1287 = vsel %vm335, %v1256, 0
    %v1289 = vsel %vm335, %v1258, 0
    %v1291 = vsel %vm335, %v1260, 0
    %v1293 = vsel %vm335, %v1262, 0
    %v1295 = vsel %vm335, %v1264, 0
    %v1297 = vsel %vm335, %v1266, 0
    %v1299 = vsel %vm335, %v1268, 0
    %v1301 = vsel %vm335, %v1270, 0
    %v1303 = vsel %vm335, %v1272, 0
    %1305 = vmatprep.subr.mxu0 0.0
    %1306 = vmatpush1.xpose.msra.mxu0 %v1289
    %1307 = vmatprep.subr.mxu0 0.0
    %1308 = vmatpush1.xpose.msra.mxu0 %v1291
    %1309 = vmatprep.subr.mxu0 0.0
    %1310 = vmatpush1.xpose.msra.mxu0 %v1293
    %1311 = vmatprep.subr.mxu0 0.0
    %1312 = vmatpush1.xpose.msra.mxu0 %v1295
    %1313 = vmatprep.subr.mxu0 0.0
    %1314 = vmatpush1.xpose.msra.mxu0 %v1297
    %1315 = vmatprep.subr.mxu0 0.0
    %1316 = vmatpush1.xpose.msra.mxu0 %v1299
    %1317 = vmatprep.subr.mxu0 0.0
    %1318 = vmatpush1.xpose.msra.mxu0 %v1301
    %1319 = vmatprep.subr.mxu0 0.0
    %1320 = vmatpush1.xpose.msra.mxu0 %v1303
    %1321 = vmatprep.subr.mxu0 0.0
    %1322 = vmatpush1.xpose.msra.mxu0 0.0
    %1323 = vmatprep.subr.mxu0 0.0
    %1324 = vmatpush1.xpose.msra.mxu0 0.0
    %1325 = vmatprep.subr.mxu0 0.0
    %1326 = vmatpush1.xpose.msra.mxu0 0.0
    %1327 = vmatprep.subr.mxu0 0.0
    %1328 = vmatpush1.xpose.msra.mxu0 0.0
    %1329 = vmatprep.subr.mxu0 0.0
    %1330 = vmatpush1.xpose.msra.mxu0 0.0
    %1331 = vmatprep.subr.mxu0 0.0
    %1332 = vmatpush1.xpose.msra.mxu0 0.0
    %1333 = vmatprep.subr.mxu0 0.0
    %1334 = vmatpush1.xpose.msra.mxu0 0.0
    %1335 = vmatprep.subr.mxu0 0.0
    %1336 = vmatpush1.xpose.msra.mxu0 0.0
    %1337 = vmatprep.subr.mxu0 0.0
    %1338 = vmatpush1.xpose.msra.mxu0 0.0
    %1339 = vmatprep.subr.mxu0 0.0
    %1340 = vmatpush1.xpose.msra.mxu0 0.0
    %1341 = vmatprep.subr.mxu0 0.0
    %1342 = vmatpush1.xpose.msra.mxu0 0.0
    %1343 = vmatprep.subr.mxu0 0.0
    %1344 = vmatpush1.xpose.msra.mxu0 0.0
    %1345 = vmatprep.subr.mxu0 0.0
    %1346 = vmatpush1.xpose.msra.mxu0 0.0
    %1347 = vmatprep.subr.mxu0 0.0
    %1348 = vmatpush1.xpose.msra.mxu0 0.0
    %1349 = vmatprep.subr.mxu0 0.0
    %1350 = vmatpush1.xpose.msra.mxu0 0.0
    %1351 = vmatprep.subr.mxu0 0.0
    %1352 = vmatpush1.xpose.msra.mxu0 0.0
    %1353 = vmatprep.subr.mxu0 0.0
    %1354 = vmatpush1.xpose.msra.mxu0 0.0
    %1355 = vmatprep.subr.mxu0 0.0
    %1356 = vmatpush1.xpose.msra.mxu0 0.0
    %1357 = vmatprep.subr.mxu0 0.0
    %1358 = vmatpush1.xpose.msra.mxu0 0.0
    %1359 = vmatprep.subr.mxu0 0.0
    %1360 = vmatpush1.xpose.msra.mxu0 0.0
    %1361 = vmatprep.subr.mxu0 0.0
    %1362 = vmatpush1.xpose.msra.mxu0 0.0
    %1363 = vmatprep.subr.mxu0 0.0
    %1364 = vmatpush1.xpose.msra.mxu0 0.0
    %1365 = vmatprep.subr.mxu0 0.0
    %1366 = vmatpush1.xpose.msra.mxu0 0.0
    %1367 = vmatprep.subr.mxu0 0.0
    %1368 = vmatpush1.xpose.msra.mxu0 0.0
    %1369 = vmatprep.mubr.f32.mxu0 0.0
    %1370 = vmatmul.mubr.f32.gmra.mrb[0].mxu0 %v1273
    %v1371 = vpop.f32.mrb[0].mxu0
    %v1372 = vadd.f32 %v205, %v1371
    %v1373 = vpop.f32.mrb[0].mxu0
    %1374 = vmatprep.mubr.f32.mxu0 0.0
    %1375 = vmatmul.mubr.f32.gmra.mrb[0].mxu0 %v1275
    %v1376 = vpop.f32.mrb[0].mxu0
    %v1377 = vadd.f32 %v206, %v1376
    %v1378 = vpop.f32.mrb[0].mxu0
    %1379 = vmatprep.mubr.f32.mxu0 0.0
    %1380 = vmatmul.mubr.f32.gmra.mrb[0].mxu0 %v1277
    %v1381 = vpop.f32.mrb[0].mxu0
    %v1382 = vadd.f32 %v207, %v1381
    %v1383 = vpop.f32.mrb[0].mxu0
    %1384 = vmatprep.mubr.f32.mxu0 0.0
    %1385 = vmatmul.mubr.f32.gmra.mrb[0].mxu0 %v1279
    %v1386 = vpop.f32.mrb[0].mxu0
    %v1387 = vadd.f32 %v208, %v1386
    %v1388 = vpop.f32.mrb[0].mxu0
    %1389 = vmatprep.mubr.f32.mxu0 0.0
    %1390 = vmatmul.mubr.f32.gmra.mrb[0].mxu0 %v1281
    %v1391 = vpop.f32.mrb[0].mxu0
    %v1392 = vadd.f32 %v209, %v1391
    %v1393 = vpop.f32.mrb[0].mxu0
    %1394 = vmatprep.mubr.f32.mxu0 0.0
    %1395 = vmatmul.mubr.f32.gmra.mrb[0].mxu0 %v1283
    %v1396 = vpop.f32.mrb[0].mxu0
    %v1397 = vadd.f32 %v210, %v1396
    %v1398 = vpop.f32.mrb[0].mxu0
    %1399 = vmatprep.mubr.f32.mxu0 0.0
    %1400 = vmatmul.mubr.f32.gmra.mrb[0].mxu0 %v1285
    %v1401 = vpop.f32.mrb[0].mxu0
    %v1402 = vadd.f32 %v211, %v1401
    %v1403 = vpop.f32.mrb[0].mxu0
    %1404 = vmatprep.mubr.f32.mxu0 0.0
    %1405 = vmatmul.mubr.f32.gmra.mrb[0].mxu0 %v1287
    %v1406 = vpop.f32.mrb[0].mxu0
    %v1407 = vadd.f32 %v212, %v1406
    %v1408 = vpop.f32.mrb[0].mxu0
    %1409 = vdwg.mxu0
    %v1410 = vsel %vm473, %v1372, -inf
    %1411 = vmax.xlane.f32.xlu0 %v1410
    %v1412 = vpop.xlane.xlu0 %1411
    %v1413 = vsel %vm473, %v1377, -inf
    %1414 = vmax.xlane.f32.xlu0 %v1413
    %v1415 = vpop.xlane.xlu0 %1414
    %v1416 = vsel %vm473, %v1382, -inf
    %1417 = vmax.xlane.f32.xlu0 %v1416
    %v1418 = vpop.xlane.xlu0 %1417
    %v1419 = vsel %vm473, %v1387, -inf
    %1420 = vmax.xlane.f32.xlu0 %v1419
    %v1421 = vpop.xlane.xlu0 %1420
    %v1422 = vsel %vm473, %v1392, -inf
    %1423 = vmax.xlane.f32.xlu0 %v1422
    %v1424 = vpop.xlane.xlu0 %1423
    %v1425 = vsel %vm473, %v1397, -inf
    %1426 = vmax.xlane.f32.xlu0 %v1425
    %v1427 = vpop.xlane.xlu0 %1426
    %v1428 = vsel %vm473, %v1402, -inf
    %1429 = vmax.xlane.f32.xlu0 %v1428
    %v1430 = vpop.xlane.xlu0 %1429
    %v1431 = vsel %vm473, %v1407, -inf
    %1432 = vmax.xlane.f32.xlu0 %v1431
    %v1433 = vpop.xlane.xlu0 %1432
    %v1434 = vsub.f32 %v1372, %v1412
    %v1435 = vsub.f32 %v1377, %v1415
    %v1436 = vsub.f32 %v1382, %v1418
    %v1437 = vsub.f32 %v1387, %v1421
    %v1438 = vsub.f32 %v1392, %v1424
    %v1439 = vsub.f32 %v1397, %v1427
    %v1440 = vsub.f32 %v1402, %v1430
    %v1441 = vsub.f32 %v1407, %v1433
    %v1442 = vmul.f32 %v1434, 1.442695
    %v1443 = vpow.pop %v1442
    %v1444 = vmul.f32 %v1435, 1.442695
    %v1445 = vpow.pop %v1444
    %v1446 = vmul.f32 %v1436, 1.442695
    %v1447 = vpow.pop %v1446
    %v1448 = vmul.f32 %v1437, 1.442695
    %v1449 = vpow.pop %v1448
    %v1450 = vmul.f32 %v1438, 1.442695
    %v1451 = vpow.pop %v1450
    %v1452 = vmul.f32 %v1439, 1.442695
    %v1453 = vpow.pop %v1452
    %v1454 = vmul.f32 %v1440, 1.442695
    %v1455 = vpow.pop %v1454
    %v1456 = vmul.f32 %v1441, 1.442695
    %v1457 = vpow.pop %v1456
    %v1458 = vsel %vm473, %v1443, 0.0
    %1459 = vadd.xlane.f32.xlu0 %v1458
    %v1460 = vpop.xlane.xlu0 %1459
    %v1461 = vsel %vm473, %v1445, 0.0
    %1462 = vadd.xlane.f32.xlu0 %v1461
    %v1463 = vpop.xlane.xlu0 %1462
    %v1464 = vsel %vm473, %v1447, 0.0
    %1465 = vadd.xlane.f32.xlu0 %v1464
    %v1466 = vpop.xlane.xlu0 %1465
    %v1467 = vsel %vm473, %v1449, 0.0
    %1468 = vadd.xlane.f32.xlu0 %v1467
    %v1469 = vpop.xlane.xlu0 %1468
    %v1470 = vsel %vm473, %v1451, 0.0
    %1471 = vadd.xlane.f32.xlu0 %v1470
    %v1472 = vpop.xlane.xlu0 %1471
    %v1473 = vsel %vm473, %v1453, 0.0
    %1474 = vadd.xlane.f32.xlu0 %v1473
    %v1475 = vpop.xlane.xlu0 %1474
    %v1476 = vsel %vm473, %v1455, 0.0
    %1477 = vadd.xlane.f32.xlu0 %v1476
    %v1478 = vpop.xlane.xlu0 %1477
    %v1479 = vsel %vm473, %v1457, 0.0
    %1480 = vadd.xlane.f32.xlu0 %v1479
    %v1481 = vpop.xlane.xlu0 %1480
    %v1482 = vrcp.pop %v1460
    %v1483 = vrcp.pop %v1463
    %v1484 = vrcp.pop %v1466
    %v1485 = vrcp.pop %v1469
    %v1486 = vrcp.pop %v1472
    %v1487 = vrcp.pop %v1475
    %v1488 = vrcp.pop %v1478
    %v1489 = vrcp.pop %v1481
    %v1490 = vmul.f32 %v1443, %v1482
    %v1491 = vmul.f32 %v1445, %v1483
    %v1492 = vmul.f32 %v1447, %v1484
    %v1493 = vmul.f32 %v1449, %v1485
    %v1494 = vmul.f32 %v1451, %v1486
    %v1495 = vmul.f32 %v1453, %v1487
    %v1496 = vmul.f32 %v1455, %v1488
    %v1497 = vmul.f32 %v1457, %v1489
    %1498 = vrot.lane.b32.xlu0 %v1235, 64
    %v1499 = vpop.permute.xlu0 %1498
    %1500 = vrot.lane.b32.xlu0 %v1240, 64
    %v1501 = vpop.permute.xlu0 %1500
    %1502 = vrot.lane.b32.xlu0 %v1246, 64
    %v1503 = vpop.permute.xlu0 %1502
    %1504 = vrot.lane.b32.xlu0 %v1248, 64
    %v1505 = vpop.permute.xlu0 %1504
    %1506 = vrot.lane.b32.xlu0 %v1250, 64
    %v1507 = vpop.permute.xlu0 %1506
    %1508 = vrot.lane.b32.xlu0 %v1252, 64
    %v1509 = vpop.permute.xlu0 %1508
    %1510 = vrot.lane.b32.xlu0 %v1254, 64
    %v1511 = vpop.permute.xlu0 %1510
    %1512 = vrot.lane.b32.xlu0 %v1256, 64
    %v1513 = vpop.permute.xlu0 %1512
    %v1523 = vsel %vm473, %v1490, 0
    %v1526 = vsel %vm473, %v1491, 0
    %v1529 = vsel %vm473, %v1492, 0
    %v1532 = vsel %vm473, %v1493, 0
    %v1535 = vsel %vm473, %v1494, 0
    %v1538 = vsel %vm473, %v1495, 0
    %v1541 = vsel %vm473, %v1496, 0
    %v1544 = vsel %vm473, %v1497, 0
    %1546 = vmatprep.subr.mxu0 0.0
    %1547 = vmatpush1.msra.mxu0 %v1499
    %1548 = vmatprep.subr.mxu0 0.0
    %1549 = vmatpush1.msra.mxu0 %v1501
    %1550 = vmatprep.subr.mxu0 0.0
    %1551 = vmatpush1.msra.mxu0 %v1503
    %1552 = vmatprep.subr.mxu0 0.0
    %1553 = vmatpush1.msra.mxu0 %v1505
    %1554 = vmatprep.subr.mxu0 0.0
    %1555 = vmatpush1.msra.mxu0 %v1507
    %1556 = vmatprep.subr.mxu0 0.0
    %1557 = vmatpush1.msra.mxu0 %v1509
    %1558 = vmatprep.subr.mxu0 0.0
    %1559 = vmatpush1.msra.mxu0 %v1511
    %1560 = vmatprep.subr.mxu0 0.0
    %1561 = vmatpush1.msra.mxu0 %v1513
    %1562 = vmatprep.subr.mxu0 0.0
    %1563 = vmatpush1.msra.mxu0 0.0
    %1564 = vmatprep.subr.mxu0 0.0
    %1565 = vmatpush1.msra.mxu0 0.0
    %1566 = vmatprep.subr.mxu0 0.0
    %1567 = vmatpush1.msra.mxu0 0.0
    %1568 = vmatprep.subr.mxu0 0.0
    %1569 = vmatpush1.msra.mxu0 0.0
    %1570 = vmatprep.subr.mxu0 0.0
    %1571 = vmatpush1.msra.mxu0 0.0
    %1572 = vmatprep.subr.mxu0 0.0
    %1573 = vmatpush1.msra.mxu0 0.0
    %1574 = vmatprep.subr.mxu0 0.0
    %1575 = vmatpush1.msra.mxu0 0.0
    %1576 = vmatprep.subr.mxu0 0.0
    %1577 = vmatpush1.msra.mxu0 0.0
    %1578 = vmatprep.subr.mxu0 0.0
    %1579 = vmatpush1.msra.mxu0 0.0
    %1580 = vmatprep.subr.mxu0 0.0
    %1581 = vmatpush1.msra.mxu0 0.0
    %1582 = vmatprep.subr.mxu0 0.0
    %1583 = vmatpush1.msra.mxu0 0.0
    %1584 = vmatprep.subr.mxu0 0.0
    %1585 = vmatpush1.msra.mxu0 0.0
    %1586 = vmatprep.subr.mxu0 0.0
    %1587 = vmatpush1.msra.mxu0 0.0
    %1588 = vmatprep.subr.mxu0 0.0
    %1589 = vmatpush1.msra.mxu0 0.0
    %1590 = vmatprep.subr.mxu0 0.0
    %1591 = vmatpush1.msra.mxu0 0.0
    %1592 = vmatprep.subr.mxu0 0.0
    %1593 = vmatpush1.msra.mxu0 0.0
    %1594 = vmatprep.subr.mxu0 0.0
    %1595 = vmatpush1.msra.mxu0 0.0
    %1596 = vmatprep.subr.mxu0 0.0
    %1597 = vmatpush1.msra.mxu0 0.0
    %1598 = vmatprep.subr.mxu0 0.0
    %1599 = vmatpush1.msra.mxu0 0.0
    %1600 = vmatprep.subr.mxu0 0.0
    %1601 = vmatpush1.msra.mxu0 0.0
    %1602 = vmatprep.subr.mxu0 0.0
    %1603 = vmatpush1.msra.mxu0 0.0
    %1604 = vmatprep.subr.mxu0 0.0
    %1605 = vmatpush1.msra.mxu0 0.0
    %1606 = vmatprep.subr.mxu0 0.0
    %1607 = vmatpush1.msra.mxu0 0.0
    %1608 = vmatprep.subr.mxu0 0.0
    %1609 = vmatpush1.msra.mxu0 0.0
    %1610 = vmatprep.mubr.f32.mxu0 0.0
    %1611 = vmatmul.mubr.f32.gmra.mrb[0].mxu0 %v1523
    %v1612 = vpop.f32.mrb[0].mxu0
    %v1613 = vadd.f32 0.0, %v1612
    %v1614 = vpop.f32.mrb[0].mxu0
    %1615 = vmatprep.mubr.f32.mxu0 0.0
    %1616 = vmatmul.mubr.f32.gmra.mrb[0].mxu0 %v1526
    %v1617 = vpop.f32.mrb[0].mxu0
    %v1618 = vadd.f32 0.0, %v1617
    %v1619 = vpop.f32.mrb[0].mxu0
    %1620 = vmatprep.mubr.f32.mxu0 0.0
    %1621 = vmatmul.mubr.f32.gmra.mrb[0].mxu0 %v1529
    %v1622 = vpop.f32.mrb[0].mxu0
    %v1623 = vadd.f32 0.0, %v1622
    %v1624 = vpop.f32.mrb[0].mxu0
    %1625 = vmatprep.mubr.f32.mxu0 0.0
    %1626 = vmatmul.mubr.f32.gmra.mrb[0].mxu0 %v1532
    %v1627 = vpop.f32.mrb[0].mxu0
    %v1628 = vadd.f32 0.0, %v1627
    %v1629 = vpop.f32.mrb[0].mxu0
    %1630 = vmatprep.mubr.f32.mxu0 0.0
    %1631 = vmatmul.mubr.f32.gmra.mrb[0].mxu0 %v1535
    %v1632 = vpop.f32.mrb[0].mxu0
    %v1633 = vadd.f32 0.0, %v1632
    %v1634 = vpop.f32.mrb[0].mxu0
    %1635 = vmatprep.mubr.f32.mxu0 0.0
    %1636 = vmatmul.mubr.f32.gmra.mrb[0].mxu0 %v1538
    %v1637 = vpop.f32.mrb[0].mxu0
    %v1638 = vadd.f32 0.0, %v1637
    %v1639 = vpop.f32.mrb[0].mxu0
    %1640 = vmatprep.mubr.f32.mxu0 0.0
    %1641 = vmatmul.mubr.f32.gmra.mrb[0].mxu0 %v1541
    %v1642 = vpop.f32.mrb[0].mxu0
    %v1643 = vadd.f32 0.0, %v1642
    %v1644 = vpop.f32.mrb[0].mxu0
    %1645 = vmatprep.mubr.f32.mxu0 0.0
    %1646 = vmatmul.mubr.f32.gmra.mrb[0].mxu0 %v1544
    %v1647 = vpop.f32.mrb[0].mxu0
    %v1648 = vadd.f32 0.0, %v1647
    %v1649 = vpop.f32.mrb[0].mxu0
    %1650 = vdwg.mxu0
    %1653 = vrot.lane.b32.xlu0 %v1623, 8
    %v1654 = vpop.permute.xlu0 %1653
    %1655 = vrot.lane.b32.xlu0 %v1628, 8
    %v1656 = vpop.permute.xlu0 %1655
    %1661 = vrot.lane.b32.xlu0 %v1633, 16
    %v1662 = vpop.permute.xlu0 %1661
    %1663 = vrot.lane.b32.xlu0 %v1638, 16
    %v1664 = vpop.permute.xlu0 %1663
    %1669 = vrot.lane.b32.xlu0 %v1643, 24
    %v1670 = vpop.permute.xlu0 %1669
    %1671 = vrot.lane.b32.xlu0 %v1648, 24
    %v1672 = vpop.permute.xlu0 %1671
    %v1675 = vsel %vm335, %v1613, %v1654
    %v1676 = vsel %vm335, %v1618, %v1656
    %v1677 = vsel %vm741, %v1675, %v1662
    %v1678 = vsel %vm741, %v1676, %v1664
    %v1679 = vsel %vm744, %v1677, %v1670
    %v1680 = vsel %vm744, %v1678, %v1672
    %s1681 = scalar_lea.vmem %s6, 32
    %v1682 = vld [vmem:[%s1681] sm:$0xff]
    %v1683 = vld [vmem:[%s1681 + $0x8] sm:$0xff]
    %v1684 = vld [vmem:[%s1681 + $0x10] sm:$0xff]
    %v1685 = vld [vmem:[%s1681 + $0x18] sm:$0xff]
    %s1686 = scalar_lea.vmem [#allocation8], 1
    %v1687 = vld [vmem:[%s1686] sm:$0x1]
    %v1689 = vlaneseq
    %v1690 = vshrl.u32 %v1689, 7
    %v1691 = vsub.s32 0, %v1690
    %v1692 = vrot.slane %v1687, %v1691
    %v1695 = vsel %vm155, %v1679, 0
    %v1698 = vsel %vm155, %v1680, 0
    %1700 = vmatprep.subr.mxu0 0.0
    %1701 = vmatpush1.msra.mxu0 %v1682
    %1702 = vmatprep.subr.mxu0 0.0
    %1703 = vmatpush1.msra.mxu0 %v1683
    %1704 = vmatprep.subr.mxu0 0.0
    %1705 = vmatpush1.msra.mxu0 %v1684
    %1706 = vmatprep.subr.mxu0 0.0
    %1707 = vmatpush1.msra.mxu0 %v1685
    %1708 = vmatprep.subr.mxu0 0.0
    %1709 = vmatpush1.msra.mxu0 0.0
    %1710 = vmatprep.subr.mxu0 0.0
    %1711 = vmatpush1.msra.mxu0 0.0
    %1712 = vmatprep.subr.mxu0 0.0
    %1713 = vmatpush1.msra.mxu0 0.0
    %1714 = vmatprep.subr.mxu0 0.0
    %1715 = vmatpush1.msra.mxu0 0.0
    %1716 = vmatprep.subr.mxu0 0.0
    %1717 = vmatpush1.msra.mxu0 0.0
    %1718 = vmatprep.subr.mxu0 0.0
    %1719 = vmatpush1.msra.mxu0 0.0
    %1720 = vmatprep.subr.mxu0 0.0
    %1721 = vmatpush1.msra.mxu0 0.0
    %1722 = vmatprep.subr.mxu0 0.0
    %1723 = vmatpush1.msra.mxu0 0.0
    %1724 = vmatprep.subr.mxu0 0.0
    %1725 = vmatpush1.msra.mxu0 0.0
    %1726 = vmatprep.subr.mxu0 0.0
    %1727 = vmatpush1.msra.mxu0 0.0
    %1728 = vmatprep.subr.mxu0 0.0
    %1729 = vmatpush1.msra.mxu0 0.0
    %1730 = vmatprep.subr.mxu0 0.0
    %1731 = vmatpush1.msra.mxu0 0.0
    %1732 = vmatprep.subr.mxu0 0.0
    %1733 = vmatpush1.msra.mxu0 0.0
    %1734 = vmatprep.subr.mxu0 0.0
    %1735 = vmatpush1.msra.mxu0 0.0
    %1736 = vmatprep.subr.mxu0 0.0
    %1737 = vmatpush1.msra.mxu0 0.0
    %1738 = vmatprep.subr.mxu0 0.0
    %1739 = vmatpush1.msra.mxu0 0.0
    %1740 = vmatprep.subr.mxu0 0.0
    %1741 = vmatpush1.msra.mxu0 0.0
    %1742 = vmatprep.subr.mxu0 0.0
    %1743 = vmatpush1.msra.mxu0 0.0
    %1744 = vmatprep.subr.mxu0 0.0
    %1745 = vmatpush1.msra.mxu0 0.0
    %1746 = vmatprep.subr.mxu0 0.0
    %1747 = vmatpush1.msra.mxu0 0.0
    %1748 = vmatprep.subr.mxu0 0.0
    %1749 = vmatpush1.msra.mxu0 0.0
    %1750 = vmatprep.subr.mxu0 0.0
    %1751 = vmatpush1.msra.mxu0 0.0
    %1752 = vmatprep.subr.mxu0 0.0
    %1753 = vmatpush1.msra.mxu0 0.0
    %1754 = vmatprep.subr.mxu0 0.0
    %1755 = vmatpush1.msra.mxu0 0.0
    %1756 = vmatprep.subr.mxu0 0.0
    %1757 = vmatpush1.msra.mxu0 0.0
    %1758 = vmatprep.subr.mxu0 0.0
    %1759 = vmatpush1.msra.mxu0 0.0
    %1760 = vmatprep.subr.mxu0 0.0
    %1761 = vmatpush1.msra.mxu0 0.0
    %1762 = vmatprep.subr.mxu0 0.0
    %1763 = vmatpush1.msra.mxu0 0.0
    %1764 = vmatprep.mubr.f32.mxu0 0.0
    %1765 = vmatmul.mubr.f32.gmra.mrb[0].mxu0 %v1695
    %v1766 = vpop.f32.mrb[0].mxu0
    %v1767 = vadd.f32 %v1692, %v1766
    %v1768 = vpop.f32.mrb[0].mxu0
    %1769 = vmatprep.mubr.f32.mxu0 0.0
    %1770 = vmatmul.mubr.f32.gmra.mrb[0].mxu0 %v1698
    %v1771 = vpop.f32.mrb[0].mxu0
    %v1772 = vadd.f32 %v1692, %v1771
    %v1773 = vpop.f32.mrb[0].mxu0
    %1774 = vdwg.mxu0
    %v1775 = vadd.f32 %v1767, %v1147
    %v1776 = vadd.f32 %v1772, %v1148
    %s1777 = scalar_lea.vmem [#allocation10], 1
    %v1778 = vld [vmem:[%s1777] sm:$0x1]
    %s1779 = scalar_lea.vmem [#allocation11], 1
    %v1780 = vld [vmem:[%s1779] sm:$0x1]
    %v1781 = vsel %vm155, %v1775, 0.0
    %1782 = vadd.xlane.f32.xlu0 %v1781
    %v1783 = vpop.xlane.xlu0 %1782
    %v1784 = vsel %vm155, %v1776, 0.0
    %1785 = vadd.xlane.f32.xlu0 %v1784
    %v1786 = vpop.xlane.xlu0 %1785
    %v1787 = vmul.f32 %v1783, %v162
    %v1788 = vmul.f32 %v1786, %v162
    %v1789 = vmul.f32 %v1775, %v1775
    %v1790 = vmul.f32 %v1776, %v1776
    %v1791 = vsel %vm155, %v1789, 0.0
    %1792 = vadd.xlane.f32.xlu0 %v1791
    %v1793 = vpop.xlane.xlu0 %1792
    %v1794 = vsel %vm155, %v1790, 0.0
    %1795 = vadd.xlane.f32.xlu0 %v1794
    %v1796 = vpop.xlane.xlu0 %1795
    %v1797 = vmul.f32 %v1793, %v162
    %v1798 = vmul.f32 %v1796, %v162
    %v1799 = vmul.f32 %v1787, %v1787
    %v1800 = vmul.f32 %v1788, %v1788
    %v1801 = vsub.f32 %v1797, %v1799
    %v1802 = vsub.f32 %v1798, %v1800
    %v1803 = vmax.f32 %v1801, 0.0
    %v1804 = vmax.f32 %v1802, 0.0
    %v1805 = vsub.f32 %v1775, %v1787
    %v1806 = vsub.f32 %v1776, %v1788
    %v1807 = vadd.f32 %v1803, 1e-12
    %v1808 = vadd.f32 %v1804, 1e-12
    %v1809 = vrsqrt.pop %v1807
    %v1810 = vrsqrt.pop %v1808
    %v1811 = vmul.f32 %v1805, %v1809
    %v1812 = vmul.f32 %v1806, %v1810
    %v1814 = vlaneseq
    %v1815 = vshrl.u32 %v1814, 7
    %v1816 = vsub.s32 0, %v1815
    %v1817 = vrot.slane %v1778, %v1816
    %v1819 = vmul.f32 %v1811, %v1817
    %v1820 = vmul.f32 %v1812, %v1817
    %v1822 = vlaneseq
    %v1823 = vshrl.u32 %v1822, 7
    %v1824 = vsub.s32 0, %v1823
    %v1825 = vrot.slane %v1780, %v1824
    %v1827 = vadd.f32 %v1819, %v1825
    %v1828 = vadd.f32 %v1820, %v1825
    %s1829 = scalar_lea.vmem [#allocation13], 32
    %v1830 = vld [vmem:[%s1829] sm:$0xff]
    %v1831 = vld [vmem:[%s1829 + $0x8] sm:$0xff]
    %v1832 = vld [vmem:[%s1829 + $0x10] sm:$0xff]
    %v1833 = vld [vmem:[%s1829 + $0x18] sm:$0xff]
    %s1834 = scalar_lea.vmem %s11, 1
    %v1835 = vld [vmem:[%s1834] sm:$0x1]
    %v1837 = vlaneseq
    %v1838 = vshrl.u32 %v1837, 7
    %v1839 = vsub.s32 0, %v1838
    %v1840 = vrot.slane %v1835, %v1839
    %v1843 = vsel %vm155, %v1827, 0
    %v1846 = vsel %vm155, %v1828, 0
    %1848 = vmatprep.subr.mxu0 0.0
    %1849 = vmatpush1.msra.mxu0 %v1830
    %1850 = vmatprep.subr.mxu0 0.0
    %1851 = vmatpush1.msra.mxu0 %v1831
    %1852 = vmatprep.subr.mxu0 0.0
    %1853 = vmatpush1.msra.mxu0 %v1832
    %1854 = vmatprep.subr.mxu0 0.0
    %1855 = vmatpush1.msra.mxu0 %v1833
    %1856 = vmatprep.subr.mxu0 0.0
    %1857 = vmatpush1.msra.mxu0 0.0
    %1858 = vmatprep.subr.mxu0 0.0
    %1859 = vmatpush1.msra.mxu0 0.0
    %1860 = vmatprep.subr.mxu0 0.0
    %1861 = vmatpush1.msra.mxu0 0.0
    %1862 = vmatprep.subr.mxu0 0.0
    %1863 = vmatpush1.msra.mxu0 0.0
    %1864 = vmatprep.subr.mxu0 0.0
    %1865 = vmatpush1.msra.mxu0 0.0
    %1866 = vmatprep.subr.mxu0 0.0
    %1867 = vmatpush1.msra.mxu0 0.0
    %1868 = vmatprep.subr.mxu0 0.0
    %1869 = vmatpush1.msra.mxu0 0.0
    %1870 = vmatprep.subr.mxu0 0.0
    %1871 = vmatpush1.msra.mxu0 0.0
    %1872 = vmatprep.subr.mxu0 0.0
    %1873 = vmatpush1.msra.mxu0 0.0
    %1874 = vmatprep.subr.mxu0 0.0
    %1875 = vmatpush1.msra.mxu0 0.0
    %1876 = vmatprep.subr.mxu0 0.0
    %1877 = vmatpush1.msra.mxu0 0.0
    %1878 = vmatprep.subr.mxu0 0.0
    %1879 = vmatpush1.msra.mxu0 0.0
    %1880 = vmatprep.subr.mxu0 0.0
    %1881 = vmatpush1.msra.mxu0 0.0
    %1882 = vmatprep.subr.mxu0 0.0
    %1883 = vmatpush1.msra.mxu0 0.0
    %1884 = vmatprep.subr.mxu0 0.0
    %1885 = vmatpush1.msra.mxu0 0.0
    %1886 = vmatprep.subr.mxu0 0.0
    %1887 = vmatpush1.msra.mxu0 0.0
    %1888 = vmatprep.subr.mxu0 0.0
    %1889 = vmatpush1.msra.mxu0 0.0
    %1890 = vmatprep.subr.mxu0 0.0
    %1891 = vmatpush1.msra.mxu0 0.0
    %1892 = vmatprep.subr.mxu0 0.0
    %1893 = vmatpush1.msra.mxu0 0.0
    %1894 = vmatprep.subr.mxu0 0.0
    %1895 = vmatpush1.msra.mxu0 0.0
    %1896 = vmatprep.subr.mxu0 0.0
    %1897 = vmatpush1.msra.mxu0 0.0
    %1898 = vmatprep.subr.mxu0 0.0
    %1899 = vmatpush1.msra.mxu0 0.0
    %1900 = vmatprep.subr.mxu0 0.0
    %1901 = vmatpush1.msra.mxu0 0.0
    %1902 = vmatprep.subr.mxu0 0.0
    %1903 = vmatpush1.msra.mxu0 0.0
    %1904 = vmatprep.subr.mxu0 0.0
    %1905 = vmatpush1.msra.mxu0 0.0
    %1906 = vmatprep.subr.mxu0 0.0
    %1907 = vmatpush1.msra.mxu0 0.0
    %1908 = vmatprep.subr.mxu0 0.0
    %1909 = vmatpush1.msra.mxu0 0.0
    %1910 = vmatprep.subr.mxu0 0.0
    %1911 = vmatpush1.msra.mxu0 0.0
    %1912 = vmatprep.mubr.f32.mxu0 0.0
    %1913 = vmatmul.mubr.f32.gmra.mrb[0].mxu0 %v1843
    %v1914 = vpop.f32.mrb[0].mxu0
    %v1915 = vadd.f32 %v1840, %v1914
    %v1916 = vpop.f32.mrb[0].mxu0
    %1917 = vmatprep.mubr.f32.mxu0 0.0
    %1918 = vmatmul.mubr.f32.gmra.mrb[0].mxu0 %v1846
    %v1919 = vpop.f32.mrb[0].mxu0
    %v1920 = vadd.f32 %v1840, %v1919
    %v1921 = vpop.f32.mrb[0].mxu0
    %1922 = vdwg.mxu0
    %v1923 = vmul.f32 %v1915, 0.5
    %v1924 = vmul.f32 %v1920, 0.5
    %v1925 = vmul.f32 %v1915, 0.044715
    %v1926 = vmul.f32 %v1920, 0.044715
    %v1927 = vmul.f32 %v1925, %v1915
    %v1928 = vmul.f32 %v1926, %v1920
    %v1929 = vmul.f32 %v1927, %v1915
    %v1930 = vmul.f32 %v1928, %v1920
    %v1931 = vadd.f32 %v1915, %v1929
    %v1932 = vadd.f32 %v1920, %v1930
    %v1933 = vmul.f32 %v1931, 0.7978846
    %v1934 = vmul.f32 %v1932, 0.7978846
    %v1935 = vtanh.pop %v1933
    %v1936 = vtanh.pop %v1934
    %v1937 = vadd.f32 %v1935, 1.0
    %v1938 = vadd.f32 %v1936, 1.0
    %v1939 = vmul.f32 %v1923, %v1937
    %v1940 = vmul.f32 %v1924, %v1938
    %s1941 = scalar_lea.vmem %s12, 64
    %v1942 = vld [vmem:[%s1941] sm:$0xff]
    %v1943 = vld [vmem:[%s1941 + $0x8] sm:$0xff]
    %v1944 = vld [vmem:[%s1941 + $0x10] sm:$0xff]
    %v1945 = vld [vmem:[%s1941 + $0x18] sm:$0xff]
    %v1946 = vld [vmem:[%s1941 + $0x20] sm:$0xff]
    %v1947 = vld [vmem:[%s1941 + $0x28] sm:$0xff]
    %v1948 = vld [vmem:[%s1941 + $0x30] sm:$0xff]
    %v1949 = vld [vmem:[%s1941 + $0x38] sm:$0xff]
    %s1950 = scalar_lea.vmem %s13, 1
    %v1951 = vld [vmem:[%s1950] sm:$0x1]
    %v1953 = vlaneseq
    %v1954 = vshrl.u32 %v1953, 7
    %v1955 = vsub.s32 0, %v1954
    %v1956 = vrot.slane %v1951, %v1955
    %v1959 = vsel %vm473, %v1939, 0
    %v1962 = vsel %vm473, %v1940, 0
    %1964 = vmatprep.subr.mxu0 0.0
    %1965 = vmatpush1.msra.mxu0 %v1942
    %1966 = vmatprep.subr.mxu0 0.0
    %1967 = vmatpush1.msra.mxu0 %v1943
    %1968 = vmatprep.subr.mxu0 0.0
    %1969 = vmatpush1.msra.mxu0 %v1944
    %1970 = vmatprep.subr.mxu0 0.0
    %1971 = vmatpush1.msra.mxu0 %v1945
    %1972 = vmatprep.subr.mxu0 0.0
    %1973 = vmatpush1.msra.mxu0 %v1946
    %1974 = vmatprep.subr.mxu0 0.0
    %1975 = vmatpush1.msra.mxu0 %v1947
    %1976 = vmatprep.subr.mxu0 0.0
    %1977 = vmatpush1.msra.mxu0 %v1948
    %1978 = vmatprep.subr.mxu0 0.0
    %1979 = vmatpush1.msra.mxu0 %v1949
    %1980 = vmatprep.subr.mxu0 0.0
    %1981 = vmatpush1.msra.mxu0 0.0
    %1982 = vmatprep.subr.mxu0 0.0
    %1983 = vmatpush1.msra.mxu0 0.0
    %1984 = vmatprep.subr.mxu0 0.0
    %1985 = vmatpush1.msra.mxu0 0.0
    %1986 = vmatprep.subr.mxu0 0.0
    %1987 = vmatpush1.msra.mxu0 0.0
    %1988 = vmatprep.subr.mxu0 0.0
    %1989 = vmatpush1.msra.mxu0 0.0
    %1990 = vmatprep.subr.mxu0 0.0
    %1991 = vmatpush1.msra.mxu0 0.0
    %1992 = vmatprep.subr.mxu0 0.0
    %1993 = vmatpush1.msra.mxu0 0.0
    %1994 = vmatprep.subr.mxu0 0.0
    %1995 = vmatpush1.msra.mxu0 0.0
    %1996 = vmatprep.subr.mxu0 0.0
    %1997 = vmatpush1.msra.mxu0 0.0
    %1998 = vmatprep.subr.mxu0 0.0
    %1999 = vmatpush1.msra.mxu0 0.0
    %2000 = vmatprep.subr.mxu0 0.0
    %2001 = vmatpush1.msra.mxu0 0.0
    %2002 = vmatprep.subr.mxu0 0.0
    %2003 = vmatpush1.msra.mxu0 0.0
    %2004 = vmatprep.subr.mxu0 0.0
    %2005 = vmatpush1.msra.mxu0 0.0
    %2006 = vmatprep.subr.mxu0 0.0
    %2007 = vmatpush1.msra.mxu0 0.0
    %2008 = vmatprep.subr.mxu0 0.0
    %2009 = vmatpush1.msra.mxu0 0.0
    %2010 = vmatprep.subr.mxu0 0.0
    %2011 = vmatpush1.msra.mxu0 0.0
    %2012 = vmatprep.subr.mxu0 0.0
    %2013 = vmatpush1.msra.mxu0 0.0
    %2014 = vmatprep.subr.mxu0 0.0
    %2015 = vmatpush1.msra.mxu0 0.0
    %2016 = vmatprep.subr.mxu0 0.0
    %2017 = vmatpush1.msra.mxu0 0.0
    %2018 = vmatprep.subr.mxu0 0.0
    %2019 = vmatpush1.msra.mxu0 0.0
    %2020 = vmatprep.subr.mxu0 0.0
    %2021 = vmatpush1.msra.mxu0 0.0
    %2022 = vmatprep.subr.mxu0 0.0
    %2023 = vmatpush1.msra.mxu0 0.0
    %2024 = vmatprep.subr.mxu0 0.0
    %2025 = vmatpush1.msra.mxu0 0.0
    %2026 = vmatprep.subr.mxu0 0.0
    %2027 = vmatpush1.msra.mxu0 0.0
    %2028 = vmatprep.mubr.f32.mxu0 0.0
    %2029 = vmatmul.mubr.f32.gmra.mrb[0].mxu0 %v1959
    %v2030 = vpop.f32.mrb[0].mxu0
    %v2031 = vadd.f32 %v1956, %v2030
    %v2032 = vpop.f32.mrb[0].mxu0
    %2033 = vmatprep.mubr.f32.mxu0 0.0
    %2034 = vmatmul.mubr.f32.gmra.mrb[0].mxu0 %v1962
    %v2035 = vpop.f32.mrb[0].mxu0
    %v2036 = vadd.f32 %v1956, %v2035
    %v2037 = vpop.f32.mrb[0].mxu0
    %2038 = vdwg.mxu0
    %v2039 = vadd.f32 %v2031, %v1827
    %v2040 = vadd.f32 %v2036, %v1828
    %s2041 = scalar_lea.vmem %s14, 1
    %v2042 = vld [vmem:[%s2041] sm:$0x1]
    %s2043 = scalar_lea.vmem %s15, 1
    %v2044 = vld [vmem:[%s2043] sm:$0x1]
    %v2045 = vsel %vm155, %v2039, 0.0
    %2046 = vadd.xlane.f32.xlu0 %v2045
    %v2047 = vpop.xlane.xlu0 %2046
    %v2048 = vsel %vm155, %v2040, 0.0
    %2049 = vadd.xlane.f32.xlu0 %v2048
    %v2050 = vpop.xlane.xlu0 %2049
    %v2051 = vmul.f32 %v2047, %v162
    %v2052 = vmul.f32 %v2050, %v162
    %v2053 = vmul.f32 %v2039, %v2039
    %v2054 = vmul.f32 %v2040, %v2040
    %v2055 = vsel %vm155, %v2053, 0.0
    %2056 = vadd.xlane.f32.xlu0 %v2055
    %v2057 = vpop.xlane.xlu0 %2056
    %v2058 = vsel %vm155, %v2054, 0.0
    %2059 = vadd.xlane.f32.xlu0 %v2058
    %v2060 = vpop.xlane.xlu0 %2059
    %v2061 = vmul.f32 %v2057, %v162
    %v2062 = vmul.f32 %v2060, %v162
    %v2063 = vmul.f32 %v2051, %v2051
    %v2064 = vmul.f32 %v2052, %v2052
    %v2065 = vsub.f32 %v2061, %v2063
    %v2066 = vsub.f32 %v2062, %v2064
    %v2067 = vmax.f32 %v2065, 0.0
    %v2068 = vmax.f32 %v2066, 0.0
    %v2069 = vsub.f32 %v2039, %v2051
    %v2070 = vsub.f32 %v2040, %v2052
    %v2071 = vadd.f32 %v2067, 1e-12
    %v2072 = vadd.f32 %v2068, 1e-12
    %v2073 = vrsqrt.pop %v2071
    %v2074 = vrsqrt.pop %v2072
    %v2075 = vmul.f32 %v2069, %v2073
    %v2076 = vmul.f32 %v2070, %v2074
    %v2078 = vlaneseq
    %v2079 = vshrl.u32 %v2078, 7
    %v2080 = vsub.s32 0, %v2079
    %v2081 = vrot.slane %v2042, %v2080
    %v2083 = vmul.f32 %v2075, %v2081
    %v2084 = vmul.f32 %v2076, %v2081
    %v2086 = vlaneseq
    %v2087 = vshrl.u32 %v2086, 7
    %v2088 = vsub.s32 0, %v2087
    %v2089 = vrot.slane %v2044, %v2088
    %v2091 = vadd.f32 %v2083, %v2089
    %v2092 = vadd.f32 %v2084, %v2089
    %v2094 = vrot.slane %v2092, 7
    %vm2096 = vcmask 1040384
    %v2097 = vsel %vm2096, %v2091, %v2094
    %v2098 = vld [vmem:[%s16] sm:$0xff]
    %v2099 = vld [vmem:[%s16 + $0x8] sm:$0xff]
    %v2100 = vld [vmem:[%s16 + $0x10] sm:$0xff]
    %v2101 = vld [vmem:[%s16 + $0x18] sm:$0xff]
    %v2102 = vld [vmem:[%s17] sm:$0x1]
    %v2104 = vlaneseq
    %v2105 = vshrl.u32 %v2104, 7
    %v2106 = vsub.s32 0, %v2105
    %v2107 = vrot.slane %v2102, %v2106
    %v2110 = vsel %vm155, %v2097, 0
    %2112 = vmatprep.subr.mxu0 0.0
    %2113 = vmatpush1.msra.mxu0 %v2098
    %2114 = vmatprep.subr.mxu0 0.0
    %2115 = vmatpush1.msra.mxu0 %v2099
    %2116 = vmatprep.subr.mxu0 0.0
    %2117 = vmatpush1.msra.mxu0 %v2100
    %2118 = vmatprep.subr.mxu0 0.0
    %2119 = vmatpush1.msra.mxu0 %v2101
    %2120 = vmatprep.subr.mxu0 0.0
    %2121 = vmatpush1.msra.mxu0 0.0
    %2122 = vmatprep.subr.mxu0 0.0
    %2123 = vmatpush1.msra.mxu0 0.0
    %2124 = vmatprep.subr.mxu0 0.0
    %2125 = vmatpush1.msra.mxu0 0.0
    %2126 = vmatprep.subr.mxu0 0.0
    %2127 = vmatpush1.msra.mxu0 0.0
    %2128 = vmatprep.subr.mxu0 0.0
    %2129 = vmatpush1.msra.mxu0 0.0
    %2130 = vmatprep.subr.mxu0 0.0
    %2131 = vmatpush1.msra.mxu0 0.0
    %2132 = vmatprep.subr.mxu0 0.0
    %2133 = vmatpush1.msra.mxu0 0.0
    %2134 = vmatprep.subr.mxu0 0.0
    %2135 = vmatpush1.msra.mxu0 0.0
    %2136 = vmatprep.subr.mxu0 0.0
    %2137 = vmatpush1.msra.mxu0 0.0
    %2138 = vmatprep.subr.mxu0 0.0
    %2139 = vmatpush1.msra.mxu0 0.0
    %2140 = vmatprep.subr.mxu0 0.0
    %2141 = vmatpush1.msra.mxu0 0.0
    %2142 = vmatprep.subr.mxu0 0.0
    %2143 = vmatpush1.msra.mxu0 0.0
    %2144 = vmatprep.subr.mxu0 0.0
    %2145 = vmatpush1.msra.mxu0 0.0
    %2146 = vmatprep.subr.mxu0 0.0
    %2147 = vmatpush1.msra.mxu0 0.0
    %2148 = vmatprep.subr.mxu0 0.0
    %2149 = vmatpush1.msra.mxu0 0.0
    %2150 = vmatprep.subr.mxu0 0.0
    %2151 = vmatpush1.msra.mxu0 0.0
    %2152 = vmatprep.subr.mxu0 0.0
    %2153 = vmatpush1.msra.mxu0 0.0
    %2154 = vmatprep.subr.mxu0 0.0
    %2155 = vmatpush1.msra.mxu0 0.0
    %2156 = vmatprep.subr.mxu0 0.0
    %2157 = vmatpush1.msra.mxu0 0.0
    %2158 = vmatprep.subr.mxu0 0.0
    %2159 = vmatpush1.msra.mxu0 0.0
    %2160 = vmatprep.subr.mxu0 0.0
    %2161 = vmatpush1.msra.mxu0 0.0
    %2162 = vmatprep.subr.mxu0 0.0
    %2163 = vmatpush1.msra.mxu0 0.0
    %2164 = vmatprep.subr.mxu0 0.0
    %2165 = vmatpush1.msra.mxu0 0.0
    %2166 = vmatprep.subr.mxu0 0.0
    %2167 = vmatpush1.msra.mxu0 0.0
    %2168 = vmatprep.subr.mxu0 0.0
    %2169 = vmatpush1.msra.mxu0 0.0
    %2170 = vmatprep.subr.mxu0 0.0
    %2171 = vmatpush1.msra.mxu0 0.0
    %2172 = vmatprep.subr.mxu0 0.0
    %2173 = vmatpush1.msra.mxu0 0.0
    %2174 = vmatprep.subr.mxu0 0.0
    %2175 = vmatpush1.msra.mxu0 0.0
    %2176 = vmatprep.mubr.f32.mxu0 0.0
    %2177 = vmatmul.mubr.f32.gmra.mrb[0].mxu0 %v2110
    %v2178 = vpop.f32.mrb[0].mxu0
    %v2179 = vadd.f32 %v2107, %v2178
    %v2180 = vpop.f32.mrb[0].mxu0
    %2181 = vdwg.mxu0
    %2182 = vst [vmem:[#allocation14] sm:$0x3] %v2179
    // Predicated region
    $region102: #{tpu_custom_call.1} parent=1 // pred_check
      _
    $region103: #{tpu_custom_call.1} parent=1 // pred_check_branch
      %2184 = sbr.rel (0) target = $region105
    $region104: #{tpu_custom_call.1} parent=1 // pred_region
      %s2186 = ssub.s32 32, 32
      %2187 = vsyncadd [#allocation4], %s2186
      %s2189 = sshll.u32 [#allocation14], 4
      %s2190 = int_to_ptr.vmem [resolvable:$true] %s2189
      %2192 = dma.vmem_to_hbm [thread:$0]  %s2190, 32, %s18, [#allocation4]
    $region105: #{tpu_custom_call.1} parent=1 // pred_fallthru
      _
    // Predicated region
    $region106: #{tpu_custom_call.1} parent=1 // pred_check
      _
    $region107: #{tpu_custom_call.1} parent=1 // pred_check_branch
      %2194 = sbr.rel (0) target = $region109
    $region108: #{tpu_custom_call.1} parent=1 // pred_region
      %2195 = dma.done [#allocation4], 32
    $region109: #{tpu_custom_call.1} parent=1 // pred_fallthru
      _
    %2196 = vsyncpa [#allocation3], 1
    %2197 = vsyncpa [#allocation6], 1
    %2198 = vsyncpa [#allocation9], 1
    %2199 = vsyncpa [#allocation12], 1
    %2200 = vsyncpa [#allocation4], 1

</llo_original>
